<compile_context>
chip_gen: v7x
topology: tpu7x:2x2x1
jax: 0.10.0
libtpu: 0.0.40
codegen_flags: <defaults>
</compile_context>

<pallas_src>
import math

import jax
import jax.numpy as jnp
from jax.experimental import pallas as pl
from jax.experimental.pallas import tpu as pltpu


# -------------------- problem sizes (consistent with the module) ------------
BATCH = 256           # total batch fed per pallas_call
STATE_SIZE = 32
HIDSIZE1 = 128        # fc_v / fc_a output
HIDDEN_SIZE = 64      # args.hidden_size
ATOMS = 16            # args.atoms
ACTION_SPACE = 4
NOISY_STD = 0.5       # args.noisy_std


# -------------------- Pallas kernel -----------------------------------------
def dqn_kernel(x_ref, w1_ref, b1_ref, whv_ref, bhv_ref, wha_ref, bha_ref,
               w3v_ref, w3a_ref, b3_ref, g_ref, out_ref):
    x = x_ref[...]                                                   # (TB, S) bf16

    # Layer 1 (fused fc_v | fc_a): bf16 MXU matmul, f32 accumulate / bias / relu.
    h1 = jnp.dot(x, w1_ref[...], preferred_element_type=jnp.float32) + b1_ref[...]
    h1 = jnp.maximum(h1, 0.0)                                        # (TB, 2*H1) f32

    # Split streams at the lane-aligned 128 boundary (no relayout, no zero pads).
    h1v = h1[:, :HIDSIZE1].astype(jnp.bfloat16)
    h1a = h1[:, HIDSIZE1:].astype(jnp.bfloat16)

    # Layer 2 (noisy_h_v / noisy_h_a), per-stream.
    h2v = jnp.maximum(
        jnp.dot(h1v, whv_ref[...], preferred_element_type=jnp.float32) + bhv_ref[...], 0.0)
    h2a = jnp.maximum(
        jnp.dot(h1a, wha_ref[...], preferred_element_type=jnp.float32) + bha_ref[...], 0.0)

    # Layer 3: dueling-combined logits directly (per-action mean folded in
    # w3a/b3 on the host side). Two small bf16 dots, f32 accumulate.
    logits = (jnp.dot(h2v.astype(jnp.bfloat16), w3v_ref[...],
                      preferred_element_type=jnp.float32)
              + jnp.dot(h2a.astype(jnp.bfloat16), w3a_ref[...],
                        preferred_element_type=jnp.float32)
              + b3_ref[...])                                         # (TB, A*atoms) f32

    # Per-action softmax over atoms.
    #   * Single row-wide max (softmax is shift-invariant per group, and the
    #     row max is a single constant per row, so the result is exact).
    #   * Group sums via the MXU: e @ G with G a (64, 64) block-indicator
    #     matrix, broadcasting each 16-atom group's sum into its own lanes.
    #   * Approx reciprocal on the EUP + one Newton step -> ~f32 accuracy.
    #   * One lane-dense full-tile store.
    m = jnp.max(logits, axis=-1, keepdims=True)
    e = jnp.exp(logits - m)                                          # f32
    s = jnp.dot(e, g_ref[...], preferred_element_type=jnp.float32)   # group sums, broadcast
    r = pl.reciprocal(s, approx=True)
    r = r * (2.0 - s * r)                                            # Newton refinement
    out_ref[...] = e * r                                             # (TB, A*atoms)


def _num_batch_tiles():
    """2-way batch grid only on megacore (v7x) parts; 1 step on v5e/v6e."""
    try:
        kind = jax.devices()[0].device_kind.lower()
    except Exception:
        return 1
    return 2 if ("v7" in kind or "7x" in kind) else 1


def dqn_forward(x, packed):
    """x: (B, state_size) f32; packed: fused/packed weights from pack_params."""
    b = x.shape[0]
    n_tiles = _num_batch_tiles()
    if b % n_tiles != 0 or (b // n_tiles) % 8 != 0:
        n_tiles = 1
    tb = b // n_tiles

    w1, b1, whv, bhv, wha, bha, w3v, w3a, b3, g = packed
    xb = x.astype(jnp.bfloat16)            # halves x DMA; matmuls run bf16 on the MXU
    const = lambda i: (0, 0)               # weights stay resident across grid steps

    out = pl.pallas_call(
        dqn_kernel,
        out_shape=jax.ShapeDtypeStruct((b, ACTION_SPACE * ATOMS), jnp.float32),
        grid_spec=pltpu.PrefetchScalarGridSpec(
            num_scalar_prefetch=0,
            grid=(n_tiles,),
            in_specs=[
                pl.BlockSpec((tb, STATE_SIZE), lambda i: (i, 0)),
                pl.BlockSpec(w1.shape, const),
                pl.BlockSpec(b1.shape, const),
                pl.BlockSpec(whv.shape, const),
                pl.BlockSpec(bhv.shape, const),
                pl.BlockSpec(wha.shape, const),
                pl.BlockSpec(bha.shape, const),
                pl.BlockSpec(w3v.shape, const),
                pl.BlockSpec(w3a.shape, const),
                pl.BlockSpec(b3.shape, const),
                pl.BlockSpec(g.shape, const),
            ],
            out_specs=pl.BlockSpec((tb, ACTION_SPACE * ATOMS), lambda i: (i, 0)),
        ),
        compiler_params=pltpu.CompilerParams(
            dimension_semantics=("parallel",)),   # shards the 2-step grid on v7x
    )(xb, w1, b1, whv, bhv, wha, bha, w3v, w3a, b3, g)
    return out.reshape(b, ACTION_SPACE, ATOMS)


# -------------------- deterministic parameter construction (glue) -----------
def _linear_params(key, in_f, out_f):
    """nn.Linear-style init: U(-1/sqrt(in), 1/sqrt(in)) for weight and bias."""
    kw, kb = jax.random.split(key)
    bound = 1.0 / math.sqrt(in_f)
    w = jax.random.uniform(kw, (out_f, in_f), jnp.float32, -bound, bound)
    b = jax.random.uniform(kb, (out_f,), jnp.float32, -bound, bound)
    return w.T, b.reshape(1, out_f)


def _scale_noise(key, size):
    x = jax.random.normal(key, (size,), jnp.float32)
    return jnp.sign(x) * jnp.sqrt(jnp.abs(x))


def _noisy_linear_params(key, in_f, out_f, std_init):
    """Effective (training-mode) NoisyLinear weights: mu + sigma * epsilon."""
    k_wmu, k_bmu, k_ein, k_eout = jax.random.split(key, 4)
    mu_range = 1.0 / math.sqrt(in_f)
    w_mu = jax.random.uniform(k_wmu, (out_f, in_f), jnp.float32, -mu_range, mu_range)
    w_sigma = jnp.full((out_f, in_f), std_init / math.sqrt(in_f), jnp.float32)
    b_mu = jax.random.uniform(k_bmu, (out_f,), jnp.float32, -mu_range, mu_range)
    b_sigma = jnp.full((out_f,), std_init / math.sqrt(out_f), jnp.float32)
    eps_in = _scale_noise(k_ein, in_f)
    eps_out = _scale_noise(k_eout, out_f)
    w = w_mu + w_sigma * jnp.outer(eps_out, eps_in)
    b = b_mu + b_sigma * eps_out
    return w.T, b.reshape(1, out_f)


def make_params(key):
    keys = jax.random.split(key, 6)
    wv, bv = _linear_params(keys[0], STATE_SIZE, HIDSIZE1)                        # fc_v
    wa, ba = _linear_params(keys[1], STATE_SIZE, HIDSIZE1)                        # fc_a
    whv, bhv = _noisy_linear_params(keys[2], HIDSIZE1, HIDDEN_SIZE, NOISY_STD)    # fc_noisy_h_v
    wha, bha = _noisy_linear_params(keys[3], HIDSIZE1, HIDDEN_SIZE, NOISY_STD)    # fc_noisy_h_a
    wzv, bzv = _noisy_linear_params(keys[4], HIDDEN_SIZE, ATOMS, NOISY_STD)       # fc_noisy_z_v
    wza, bza = _noisy_linear_params(keys[5], HIDDEN_SIZE,
                                    ACTION_SPACE * ATOMS, NOISY_STD)              # fc_noisy_z_a
    return (wv, bv, wa, ba, whv, bhv, wha, bha, wzv, bzv, wza, bza)


def pack_params(params):
    """Fuse the two streams and fold the dueling combine; cast matmul weights to bf16."""
    (wv, bv, wa, ba, whv, bhv, wha, bha, wzv, bzv, wza, bza) = params
    h2 = HIDDEN_SIZE

    # Layer 1: [wv | wa] -> (S, 2*H1)
    w1 = jnp.concatenate([wv, wa], axis=1)
    b1 = jnp.concatenate([bv, ba], axis=1)

    # Layer 3: dueling head with per-action mean folded into the weights.
    #   q_j = h2v @ wzv + bzv + h2a @ (wza_j - mean_k wza_k) + (bza_j - mean_k bza_k)
    wza3 = wza.reshape(h2, ACTION_SPACE, ATOMS)
    wza_adj = (wza3 - wza3.mean(axis=1, keepdims=True)).reshape(h2, ACTION_SPACE * ATOMS)
    bza3 = bza.reshape(1, ACTION_SPACE, ATOMS)
    bza_adj = (bza3 - bza3.mean(axis=1, keepdims=True)).reshape(1, ACTION_SPACE * ATOMS)
    w3v = jnp.tile(wzv, (1, ACTION_SPACE))          # value stream, tiled per action block
    b3 = jnp.tile(bzv, (1, ACTION_SPACE)) + bza_adj

    # Block-indicator matrix for MXU group sums in the softmax (f32, resident).
    g = jnp.kron(jnp.eye(ACTION_SPACE, dtype=jnp.float32),
                 jnp.ones((ATOMS, ATOMS), jnp.float32))

    bf16 = jnp.bfloat16
    return (w1.astype(bf16), b1,
            whv.astype(bf16), bhv,
            wha.astype(bf16), bha,
            w3v.astype(bf16), wza_adj.astype(bf16), b3,
            g)


# -------------------- pure-JAX reference (unfused, f32) for a sanity check ---
def dqn_reference(x, params):
    (wv, bv, wa, ba, whv, bhv, wha, bha, wzv, bzv, wza, bza) = params
    hv = jax.nn.relu(x @ wv + bv)
    hv = jax.nn.relu(hv @ whv + bhv)
    v = (hv @ wzv + bzv).reshape(-1, 1, ATOMS)
    ha = jax.nn.relu(x @ wa + ba)
    ha = jax.nn.relu(ha @ wha + bha)
    a = (ha @ wza + bza).reshape(-1, ACTION_SPACE, ATOMS)
    q = v + a - a.mean(axis=1, keepdims=True)
    return jax.nn.softmax(q, axis=2)


# -------------------- main ---------------------------------------------------
if __name__ == "__main__":
    key = jax.random.PRNGKey(0)
    k_x, k_p = jax.random.split(key)
    x = jax.random.normal(k_x, (BATCH, STATE_SIZE), jnp.float32)
    params = make_params(k_p)
    packed = pack_params(params)

    q = dqn_forward(x, packed)
    q = jax.block_until_ready(q)

    q_ref = dqn_reference(x, params)
    assert q.shape == (BATCH, ACTION_SPACE, ATOMS)
    # bf16 matmul operands (f32 accumulation) drift more than the pure-f32 path;
    # tolerances loosened accordingly. Softmax normalization stays ~f32-exact.
    assert jnp.allclose(q, q_ref, atol=5e-3, rtol=2e-2), "mismatch vs reference"
    assert jnp.allclose(jnp.sum(q, axis=-1), 1.0, atol=1e-4), "softmax not normalized"

    print("KERNEL_OK")
</pallas_src>

<mosaic_0001>
module attributes {stable_mosaic.version = 11 : i64} {
  func.func @dqn_kernel(%arg0: i32, %arg1: memref<256x32xbf16, #tpu.memory_space<vmem>>, %arg2: memref<32x256xbf16, #tpu.memory_space<vmem>>, %arg3: memref<1x256xf32, #tpu.memory_space<vmem>>, %arg4: memref<128x64xbf16, #tpu.memory_space<vmem>>, %arg5: memref<1x64xf32, #tpu.memory_space<vmem>>, %arg6: memref<128x64xbf16, #tpu.memory_space<vmem>>, %arg7: memref<1x64xf32, #tpu.memory_space<vmem>>, %arg8: memref<64x64xbf16, #tpu.memory_space<vmem>>, %arg9: memref<64x64xbf16, #tpu.memory_space<vmem>>, %arg10: memref<1x64xf32, #tpu.memory_space<vmem>>, %arg11: memref<64x64xf32, #tpu.memory_space<vmem>>, %arg12: memref<256x64xf32, #tpu.memory_space<vmem>>) attributes {dimension_semantics = [#tpu.dimension_semantics<parallel>], iteration_bounds = array<i64: 1>, scalar_prefetch = 0 : i64, scratch_operands = 0 : i64, tpu.core_type = #tpu.core_type<tc>, window_params = [{transform_indices = @transform_0, window_bounds = array<i64: 256, 32>}, {pipeline_mode = #tpu.pipeline_mode<synchronous>, transform_indices = @transform_1, window_bounds = array<i64: 32, 256>}, {pipeline_mode = #tpu.pipeline_mode<synchronous>, transform_indices = @transform_2, window_bounds = array<i64: 1, 256>}, {pipeline_mode = #tpu.pipeline_mode<synchronous>, transform_indices = @transform_3, window_bounds = array<i64: 128, 64>}, {pipeline_mode = #tpu.pipeline_mode<synchronous>, transform_indices = @transform_4, window_bounds = array<i64: 1, 64>}, {pipeline_mode = #tpu.pipeline_mode<synchronous>, transform_indices = @transform_5, window_bounds = array<i64: 128, 64>}, {pipeline_mode = #tpu.pipeline_mode<synchronous>, transform_indices = @transform_6, window_bounds = array<i64: 1, 64>}, {pipeline_mode = #tpu.pipeline_mode<synchronous>, transform_indices = @transform_7, window_bounds = array<i64: 64, 64>}, {pipeline_mode = #tpu.pipeline_mode<synchronous>, transform_indices = @transform_8, window_bounds = array<i64: 64, 64>}, {pipeline_mode = #tpu.pipeline_mode<synchronous>, transform_indices = @transform_9, window_bounds = array<i64: 1, 64>}, {pipeline_mode = #tpu.pipeline_mode<synchronous>, transform_indices = @transform_10, window_bounds = array<i64: 64, 64>}, {transform_indices = @transform_11, window_bounds = array<i64: 256, 64>}]} {
    %c0 = arith.constant 0 : index
    %c0_0 = arith.constant 0 : index
    %0 = vector.load %arg1[%c0, %c0_0] : memref<256x32xbf16, #tpu.memory_space<vmem>>, vector<256x32xbf16>
    %c0_1 = arith.constant 0 : index
    %c0_2 = arith.constant 0 : index
    %1 = vector.load %arg2[%c0_1, %c0_2] : memref<32x256xbf16, #tpu.memory_space<vmem>>, vector<32x256xbf16>
    %cst = arith.constant dense<0.000000e+00> : vector<256x256xf32>
    %2 = tpu.matmul %0, %1, %cst {dimension_numbers = #tpu.dot_dimension_numbers<[1], [0], [0], [1], [0, 0, 1, 1], [], []>} : vector<256x32xbf16>, vector<32x256xbf16>, vector<256x256xf32> -> vector<256x256xf32>
    %c0_3 = arith.constant 0 : index
    %c0_4 = arith.constant 0 : index
    %3 = vector.load %arg3[%c0_3, %c0_4] : memref<1x256xf32, #tpu.memory_space<vmem>>, vector<1x256xf32>
    %4 = vector.broadcast %3 : vector<1x256xf32> to vector<256x256xf32>
    %5 = arith.addf %2, %4 : vector<256x256xf32>
    %cst_5 = arith.constant 0.000000e+00 : f32
    %6 = vector.broadcast %cst_5 : f32 to vector<256x256xf32>
    %7 = arith.maximumf %5, %6 : vector<256x256xf32>
    %8 = vector.extract_strided_slice %7 {offsets = [0, 0], sizes = [256, 128], strides = [1, 1]} : vector<256x256xf32> to vector<256x128xf32>
    %9 = arith.truncf %8 : vector<256x128xf32> to vector<256x128xbf16>
    %10 = vector.extract_strided_slice %7 {offsets = [0, 128], sizes = [256, 128], strides = [1, 1]} : vector<256x256xf32> to vector<256x128xf32>
    %11 = arith.truncf %10 : vector<256x128xf32> to vector<256x128xbf16>
    %c0_6 = arith.constant 0 : index
    %c0_7 = arith.constant 0 : index
    %12 = vector.load %arg4[%c0_6, %c0_7] : memref<128x64xbf16, #tpu.memory_space<vmem>>, vector<128x64xbf16>
    %cst_8 = arith.constant dense<0.000000e+00> : vector<256x64xf32>
    %13 = tpu.matmul %9, %12, %cst_8 {dimension_numbers = #tpu.dot_dimension_numbers<[1], [0], [0], [1], [0, 0, 1, 1], [], []>} : vector<256x128xbf16>, vector<128x64xbf16>, vector<256x64xf32> -> vector<256x64xf32>
    %c0_9 = arith.constant 0 : index
    %c0_10 = arith.constant 0 : index
    %14 = vector.load %arg5[%c0_9, %c0_10] : memref<1x64xf32, #tpu.memory_space<vmem>>, vector<1x64xf32>
    %15 = vector.broadcast %14 : vector<1x64xf32> to vector<256x64xf32>
    %16 = arith.addf %13, %15 : vector<256x64xf32>
    %cst_11 = arith.constant 0.000000e+00 : f32
    %17 = vector.broadcast %cst_11 : f32 to vector<256x64xf32>
    %18 = arith.maximumf %16, %17 : vector<256x64xf32>
    %c0_12 = arith.constant 0 : index
    %c0_13 = arith.constant 0 : index
    %19 = vector.load %arg6[%c0_12, %c0_13] : memref<128x64xbf16, #tpu.memory_space<vmem>>, vector<128x64xbf16>
    %cst_14 = arith.constant dense<0.000000e+00> : vector<256x64xf32>
    %20 = tpu.matmul %11, %19, %cst_14 {dimension_numbers = #tpu.dot_dimension_numbers<[1], [0], [0], [1], [0, 0, 1, 1], [], []>} : vector<256x128xbf16>, vector<128x64xbf16>, vector<256x64xf32> -> vector<256x64xf32>
    %c0_15 = arith.constant 0 : index
    %c0_16 = arith.constant 0 : index
    %21 = vector.load %arg7[%c0_15, %c0_16] : memref<1x64xf32, #tpu.memory_space<vmem>>, vector<1x64xf32>
    %22 = vector.broadcast %21 : vector<1x64xf32> to vector<256x64xf32>
    %23 = arith.addf %20, %22 : vector<256x64xf32>
    %cst_17 = arith.constant 0.000000e+00 : f32
    %24 = vector.broadcast %cst_17 : f32 to vector<256x64xf32>
    %25 = arith.maximumf %23, %24 : vector<256x64xf32>
    %26 = arith.truncf %18 : vector<256x64xf32> to vector<256x64xbf16>
    %c0_18 = arith.constant 0 : index
    %c0_19 = arith.constant 0 : index
    %27 = vector.load %arg8[%c0_18, %c0_19] : memref<64x64xbf16, #tpu.memory_space<vmem>>, vector<64x64xbf16>
    %cst_20 = arith.constant dense<0.000000e+00> : vector<256x64xf32>
    %28 = tpu.matmul %26, %27, %cst_20 {dimension_numbers = #tpu.dot_dimension_numbers<[1], [0], [0], [1], [0, 0, 1, 1], [], []>} : vector<256x64xbf16>, vector<64x64xbf16>, vector<256x64xf32> -> vector<256x64xf32>
    %29 = arith.truncf %25 : vector<256x64xf32> to vector<256x64xbf16>
    %c0_21 = arith.constant 0 : index
    %c0_22 = arith.constant 0 : index
    %30 = vector.load %arg9[%c0_21, %c0_22] : memref<64x64xbf16, #tpu.memory_space<vmem>>, vector<64x64xbf16>
    %cst_23 = arith.constant dense<0.000000e+00> : vector<256x64xf32>
    %31 = tpu.matmul %29, %30, %cst_23 {dimension_numbers = #tpu.dot_dimension_numbers<[1], [0], [0], [1], [0, 0, 1, 1], [], []>} : vector<256x64xbf16>, vector<64x64xbf16>, vector<256x64xf32> -> vector<256x64xf32>
    %32 = arith.addf %28, %31 : vector<256x64xf32>
    %c0_24 = arith.constant 0 : index
    %c0_25 = arith.constant 0 : index
    %33 = vector.load %arg10[%c0_24, %c0_25] : memref<1x64xf32, #tpu.memory_space<vmem>>, vector<1x64xf32>
    %34 = vector.broadcast %33 : vector<1x64xf32> to vector<256x64xf32>
    %35 = arith.addf %32, %34 : vector<256x64xf32>
    %cst_26 = arith.constant dense<0xFF800000> : vector<256xf32>
    %36 = vector.multi_reduction <maximumf>, %35, %cst_26 [1] : vector<256x64xf32> to vector<256xf32>
    %37 = vector.shape_cast %36 : vector<256xf32> to vector<256x1xf32>
    %38 = vector.broadcast %37 : vector<256x1xf32> to vector<256x64xf32>
    %39 = arith.subf %35, %38 : vector<256x64xf32>
    %40 = math.exp %39 : vector<256x64xf32>
    %c0_27 = arith.constant 0 : index
    %c0_28 = arith.constant 0 : index
    %41 = vector.load %arg11[%c0_27, %c0_28] : memref<64x64xf32, #tpu.memory_space<vmem>>, vector<64x64xf32>
    %cst_29 = arith.constant dense<0.000000e+00> : vector<256x64xf32>
    %42 = tpu.matmul %40, %41, %cst_29 {dimension_numbers = #tpu.dot_dimension_numbers<[1], [0], [0], [1], [0, 0, 1, 1], [], []>} : vector<256x64xf32>, vector<64x64xf32>, vector<256x64xf32> -> vector<256x64xf32>
    %43 = tpu.reciprocal %42 {approx = true} : vector<256x64xf32> -> vector<256x64xf32>
    %44 = arith.mulf %42, %43 : vector<256x64xf32>
    %cst_30 = arith.constant 2.000000e+00 : f32
    %45 = vector.broadcast %cst_30 : f32 to vector<256x64xf32>
    %46 = arith.subf %45, %44 : vector<256x64xf32>
    %47 = arith.mulf %43, %46 : vector<256x64xf32>
    %48 = arith.mulf %40, %47 : vector<256x64xf32>
    %c0_31 = arith.constant 0 : index
    %c0_32 = arith.constant 0 : index
    %49 = vector.load %arg12[%c0_31, %c0_32] : memref<256x64xf32, #tpu.memory_space<vmem>>, vector<256x64xf32>
    tpu.vector_store %arg12[%c0_31, %c0_32], %48 {strides = array<i32>} : memref<256x64xf32, #tpu.memory_space<vmem>>, vector<256x64xf32>,
    return
  }
  func.func @transform_0(%arg0: i32) -> (i32, i32) {
    %c0_i32 = arith.constant 0 : i32
    %c0_i32_0 = arith.constant 0 : i32
    return %arg0, %c0_i32 : i32, i32
  }
  func.func @transform_1(%arg0: i32) -> (i32, i32) {
    %c0_i32 = arith.constant 0 : i32
    %c0_i32_0 = arith.constant 0 : i32
    %c0_i32_1 = arith.constant 0 : i32
    return %c0_i32, %c0_i32_0 : i32, i32
  }
  func.func @transform_2(%arg0: i32) -> (i32, i32) {
    %c0_i32 = arith.constant 0 : i32
    %c0_i32_0 = arith.constant 0 : i32
    %c0_i32_1 = arith.constant 0 : i32
    return %c0_i32, %c0_i32_0 : i32, i32
  }
  func.func @transform_3(%arg0: i32) -> (i32, i32) {
    %c0_i32 = arith.constant 0 : i32
    %c0_i32_0 = arith.constant 0 : i32
    %c0_i32_1 = arith.constant 0 : i32
    return %c0_i32, %c0_i32_0 : i32, i32
  }
  func.func @transform_4(%arg0: i32) -> (i32, i32) {
    %c0_i32 = arith.constant 0 : i32
    %c0_i32_0 = arith.constant 0 : i32
    %c0_i32_1 = arith.constant 0 : i32
    return %c0_i32, %c0_i32_0 : i32, i32
  }
  func.func @transform_5(%arg0: i32) -> (i32, i32) {
    %c0_i32 = arith.constant 0 : i32
    %c0_i32_0 = arith.constant 0 : i32
    %c0_i32_1 = arith.constant 0 : i32
    return %c0_i32, %c0_i32_0 : i32, i32
  }
  func.func @transform_6(%arg0: i32) -> (i32, i32) {
    %c0_i32 = arith.constant 0 : i32
    %c0_i32_0 = arith.constant 0 : i32
    %c0_i32_1 = arith.constant 0 : i32
    return %c0_i32, %c0_i32_0 : i32, i32
  }
  func.func @transform_7(%arg0: i32) -> (i32, i32) {
    %c0_i32 = arith.constant 0 : i32
    %c0_i32_0 = arith.constant 0 : i32
    %c0_i32_1 = arith.constant 0 : i32
    return %c0_i32, %c0_i32_0 : i32, i32
  }
  func.func @transform_8(%arg0: i32) -> (i32, i32) {
    %c0_i32 = arith.constant 0 : i32
    %c0_i32_0 = arith.constant 0 : i32
    %c0_i32_1 = arith.constant 0 : i32
    return %c0_i32, %c0_i32_0 : i32, i32
  }
  func.func @transform_9(%arg0: i32) -> (i32, i32) {
    %c0_i32 = arith.constant 0 : i32
    %c0_i32_0 = arith.constant 0 : i32
    %c0_i32_1 = arith.constant 0 : i32
    return %c0_i32, %c0_i32_0 : i32, i32
  }
  func.func @transform_10(%arg0: i32) -> (i32, i32) {
    %c0_i32 = arith.constant 0 : i32
    %c0_i32_0 = arith.constant 0 : i32
    %c0_i32_1 = arith.constant 0 : i32
    return %c0_i32, %c0_i32_0 : i32, i32
  }
  func.func @transform_11(%arg0: i32) -> (i32, i32) {
    %c0_i32 = arith.constant 0 : i32
    %c0_i32_0 = arith.constant 0 : i32
    return %arg0, %c0_i32 : i32, i32
  }
}

</mosaic_0001>

<llo_original>
// kernel: tpu_custom_call.1
$region0: #{tpu_custom_call.1}
  #allocation0 [shape = 'u32[]', space=smem, size = 0x4, offset = 0x4, fixed_abs, tag = 'smem constant byte address 0x4 - core index']
  #allocation1 [shape = 'u32[144,128]{1,0:T(1,128)}', space=vmem, size = 0x12000, scoped, tag = 'internal scratch']
  %s0 = inlined_call_operand.vmem [shape: bf16[256,32], index: 0, kind: input, shape index: {}]
  %s1 = inlined_call_operand.vmem [shape: bf16[32,256], index: 1, kind: input, shape index: {}]
  %s2 = inlined_call_operand.vmem [shape: f32[1,256], index: 2, kind: input, shape index: {}]
  %s3 = inlined_call_operand.vmem [shape: bf16[128,64], index: 3, kind: input, shape index: {}]
  %s4 = inlined_call_operand.vmem [shape: f32[1,64], index: 4, kind: input, shape index: {}]
  %s5 = inlined_call_operand.vmem [shape: bf16[128,64], index: 5, kind: input, shape index: {}]
  %s6 = inlined_call_operand.vmem [shape: f32[1,64], index: 6, kind: input, shape index: {}]
  %s7 = inlined_call_operand.vmem [shape: bf16[64,64], index: 7, kind: input, shape index: {}]
  %s8 = inlined_call_operand.vmem [shape: bf16[64,64], index: 8, kind: input, shape index: {}]
  %s9 = inlined_call_operand.vmem [shape: f32[1,64], index: 9, kind: input, shape index: {}]
  %s10 = inlined_call_operand.vmem [shape: f32[64,64], index: 10, kind: input, shape index: {}]
  %s11 = inlined_call_operand.vmem [shape: f32[256,64], index: 11, kind: output, shape index: {}]
  %s12 = sld [smem:[#allocation0]]
  $region54: #{tpu_custom_call.1} parent=0
    _
  %s14 = ssub.s32 1, %s12
  %s15 = scalar_select 0, %s14, %s12
  // Predicated region
  $region2: #{tpu_custom_call.1} parent=0 // pred_check
    _
  $region3: #{tpu_custom_call.1} parent=0 // pred_check_branch
    %17 = sbr.rel (0) target = $region5
  $region4: #{tpu_custom_call.1} parent=0 // pred_region
    _
  $region5: #{tpu_custom_call.1} parent=0 // pred_fallthru
    _
  // Predicated region
  $region6: #{tpu_custom_call.1} parent=0 // pred_check
    _
  $region7: #{tpu_custom_call.1} parent=0 // pred_check_branch
    %19 = sbr.rel (0) target = $region9
  $region8: #{tpu_custom_call.1} parent=0 // pred_region
    _
  $region9: #{tpu_custom_call.1} parent=0 // pred_fallthru
    _
  // Predicated region
  $region10: #{tpu_custom_call.1} parent=0 // pred_check
    _
  $region11: #{tpu_custom_call.1} parent=0 // pred_check_branch
    %21 = sbr.rel (0) target = $region13
  $region12: #{tpu_custom_call.1} parent=0 // pred_region
    _
  $region13: #{tpu_custom_call.1} parent=0 // pred_fallthru
    _
  // Predicated region
  $region14: #{tpu_custom_call.1} parent=0 // pred_check
    _
  $region15: #{tpu_custom_call.1} parent=0 // pred_check_branch
    %23 = sbr.rel (0) target = $region17
  $region16: #{tpu_custom_call.1} parent=0 // pred_region
    _
  $region17: #{tpu_custom_call.1} parent=0 // pred_fallthru
    _
  // Predicated region
  $region18: #{tpu_custom_call.1} parent=0 // pred_check
    _
  $region19: #{tpu_custom_call.1} parent=0 // pred_check_branch
    %25 = sbr.rel (0) target = $region21
  $region20: #{tpu_custom_call.1} parent=0 // pred_region
    _
  $region21: #{tpu_custom_call.1} parent=0 // pred_fallthru
    _
  // Predicated region
  $region22: #{tpu_custom_call.1} parent=0 // pred_check
    _
  $region23: #{tpu_custom_call.1} parent=0 // pred_check_branch
    %27 = sbr.rel (0) target = $region25
  $region24: #{tpu_custom_call.1} parent=0 // pred_region
    _
  $region25: #{tpu_custom_call.1} parent=0 // pred_fallthru
    _
  // Predicated region
  $region26: #{tpu_custom_call.1} parent=0 // pred_check
    _
  $region27: #{tpu_custom_call.1} parent=0 // pred_check_branch
    %29 = sbr.rel (0) target = $region29
  $region28: #{tpu_custom_call.1} parent=0 // pred_region
    _
  $region29: #{tpu_custom_call.1} parent=0 // pred_fallthru
    _
  // Predicated region
  $region30: #{tpu_custom_call.1} parent=0 // pred_check
    _
  $region31: #{tpu_custom_call.1} parent=0 // pred_check_branch
    %31 = sbr.rel (0) target = $region33
  $region32: #{tpu_custom_call.1} parent=0 // pred_region
    _
  $region33: #{tpu_custom_call.1} parent=0 // pred_fallthru
    _
  // Predicated region
  $region34: #{tpu_custom_call.1} parent=0 // pred_check
    _
  $region35: #{tpu_custom_call.1} parent=0 // pred_check_branch
    %33 = sbr.rel (0) target = $region37
  $region36: #{tpu_custom_call.1} parent=0 // pred_region
    _
  $region37: #{tpu_custom_call.1} parent=0 // pred_fallthru
    _
  // Predicated region
  $region38: #{tpu_custom_call.1} parent=0 // pred_check
    _
  $region39: #{tpu_custom_call.1} parent=0 // pred_check_branch
    %35 = sbr.rel (0) target = $region41
  $region40: #{tpu_custom_call.1} parent=0 // pred_region
    _
  $region41: #{tpu_custom_call.1} parent=0 // pred_fallthru
    _
  // Predicated region
  $region42: #{tpu_custom_call.1} parent=0 // pred_check
    _
  $region43: #{tpu_custom_call.1} parent=0 // pred_check_branch
    %37 = sbr.rel (0) target = $region45
  $region44: #{tpu_custom_call.1} parent=0 // pred_region
    _
  $region45: #{tpu_custom_call.1} parent=0 // pred_fallthru
    _
  %v39 = vld [vmem:[%s0] sm:$0xf]
  %v40 = vld [vmem:[%s0 + $0x4] sm:$0xf]
  %v41 = vld [vmem:[%s0 + $0x8] sm:$0xf]
  %v42 = vld [vmem:[%s0 + $0xc] sm:$0xf]
  %v43 = vld [vmem:[%s0 + $0x10] sm:$0xf]
  %v44 = vld [vmem:[%s0 + $0x14] sm:$0xf]
  %v45 = vld [vmem:[%s0 + $0x18] sm:$0xf]
  %v46 = vld [vmem:[%s0 + $0x1c] sm:$0xf]
  %v47 = vld [vmem:[%s0 + $0x20] sm:$0xf]
  %v48 = vld [vmem:[%s0 + $0x24] sm:$0xf]
  %v49 = vld [vmem:[%s0 + $0x28] sm:$0xf]
  %v50 = vld [vmem:[%s0 + $0x2c] sm:$0xf]
  %v51 = vld [vmem:[%s0 + $0x30] sm:$0xf]
  %v52 = vld [vmem:[%s0 + $0x34] sm:$0xf]
  %v53 = vld [vmem:[%s0 + $0x38] sm:$0xf]
  %v54 = vld [vmem:[%s0 + $0x3c] sm:$0xf]
  %v55 = vld [vmem:[%s0 + $0x40] sm:$0xf]
  %v56 = vld [vmem:[%s0 + $0x44] sm:$0xf]
  %v57 = vld [vmem:[%s0 + $0x48] sm:$0xf]
  %v58 = vld [vmem:[%s0 + $0x4c] sm:$0xf]
  %v59 = vld [vmem:[%s0 + $0x50] sm:$0xf]
  %v60 = vld [vmem:[%s0 + $0x54] sm:$0xf]
  %v61 = vld [vmem:[%s0 + $0x58] sm:$0xf]
  %v62 = vld [vmem:[%s0 + $0x5c] sm:$0xf]
  %v63 = vld [vmem:[%s0 + $0x60] sm:$0xf]
  %v64 = vld [vmem:[%s0 + $0x64] sm:$0xf]
  %v65 = vld [vmem:[%s0 + $0x68] sm:$0xf]
  %v66 = vld [vmem:[%s0 + $0x6c] sm:$0xf]
  %v67 = vld [vmem:[%s0 + $0x70] sm:$0xf]
  %v68 = vld [vmem:[%s0 + $0x74] sm:$0xf]
  %v69 = vld [vmem:[%s0 + $0x78] sm:$0xf]
  %v70 = vld [vmem:[%s0 + $0x7c] sm:$0xf]
  %v71 = vld [vmem:[%s1] sm:$0xff]
  %v72 = vld [vmem:[%s1 + $0x8] sm:$0xff]
  %v73 = vld [vmem:[%s1 + $0x10] sm:$0xff]
  %v74 = vld [vmem:[%s1 + $0x18] sm:$0xff]
  %v75 = vld [vmem:[%s2] sm:$0x3]
  %v77 = vlaneseq
  %v78 = vshrl.u32 %v77, 7
  %v79 = vsub.s32 0, %v78
  %v80 = vrot.slane %v75, %v79
  %v81 = vlaneseq
  %v82 = vshrl.u32 %v81, 7
  %v83 = vsub.s32 1, %v82
  %v84 = vrot.slane %v75, %v83
  %v119 = vunpack.c.l.b16 %v39
  %v120 = vunpack.c.l.b16 %v40
  %v121 = vunpack.c.l.b16 %v41
  %v122 = vunpack.c.l.b16 %v42
  %v123 = vunpack.c.l.b16 %v43
  %v124 = vunpack.c.l.b16 %v44
  %v125 = vunpack.c.l.b16 %v45
  %v126 = vunpack.c.l.b16 %v46
  %v127 = vunpack.c.l.b16 %v47
  %v128 = vunpack.c.l.b16 %v48
  %v129 = vunpack.c.l.b16 %v49
  %v130 = vunpack.c.l.b16 %v50
  %v131 = vunpack.c.l.b16 %v51
  %v132 = vunpack.c.l.b16 %v52
  %v133 = vunpack.c.l.b16 %v53
  %v134 = vunpack.c.l.b16 %v54
  %v135 = vunpack.c.l.b16 %v55
  %v136 = vunpack.c.l.b16 %v56
  %v137 = vunpack.c.l.b16 %v57
  %v138 = vunpack.c.l.b16 %v58
  %v139 = vunpack.c.l.b16 %v59
  %v140 = vunpack.c.l.b16 %v60
  %v141 = vunpack.c.l.b16 %v61
  %v142 = vunpack.c.l.b16 %v62
  %v143 = vunpack.c.l.b16 %v63
  %v144 = vunpack.c.l.b16 %v64
  %v145 = vunpack.c.l.b16 %v65
  %v146 = vunpack.c.l.b16 %v66
  %v147 = vunpack.c.l.b16 %v67
  %v148 = vunpack.c.l.b16 %v68
  %v149 = vunpack.c.l.b16 %v69
  %v150 = vunpack.c.l.b16 %v70
  %v151 = vpack.c.b16 %v120, %v119
  %v152 = vpack.c.b16 %v122, %v121
  %v153 = vpack.c.b16 %v124, %v123
  %v154 = vpack.c.b16 %v126, %v125
  %v155 = vpack.c.b16 %v128, %v127
  %v156 = vpack.c.b16 %v130, %v129
  %v157 = vpack.c.b16 %v132, %v131
  %v158 = vpack.c.b16 %v134, %v133
  %v159 = vpack.c.b16 %v136, %v135
  %v160 = vpack.c.b16 %v138, %v137
  %v161 = vpack.c.b16 %v140, %v139
  %v162 = vpack.c.b16 %v142, %v141
  %v163 = vpack.c.b16 %v144, %v143
  %v164 = vpack.c.b16 %v146, %v145
  %v165 = vpack.c.b16 %v148, %v147
  %v166 = vpack.c.b16 %v150, %v149
  %v171 = vunpack.c.l.b16 %v71
  %v172 = vunpack.c.h.b16 %v71
  %v173 = vunpack.c.l.b16 %v72
  %v174 = vunpack.c.h.b16 %v72
  %v175 = vunpack.c.l.b16 %v73
  %v176 = vunpack.c.h.b16 %v73
  %v177 = vunpack.c.l.b16 %v74
  %v178 = vunpack.c.h.b16 %v74
  %v179 = vpack.c.b16 %v173, %v171
  %v180 = vpack.c.b16 %v174, %v172
  %v181 = vpack.c.b16 %v177, %v175
  %v182 = vpack.c.b16 %v178, %v176
  %vm187 = vcmask 261120
  %v189 = vsel %vm187, %v151, 0
  %v192 = vsel %vm187, %v152, 0
  %v195 = vsel %vm187, %v153, 0
  %v198 = vsel %vm187, %v154, 0
  %v201 = vsel %vm187, %v155, 0
  %v204 = vsel %vm187, %v156, 0
  %v207 = vsel %vm187, %v157, 0
  %v210 = vsel %vm187, %v158, 0
  %v213 = vsel %vm187, %v159, 0
  %v216 = vsel %vm187, %v160, 0
  %v219 = vsel %vm187, %v161, 0
  %v222 = vsel %vm187, %v162, 0
  %v225 = vsel %vm187, %v163, 0
  %v228 = vsel %vm187, %v164, 0
  %v231 = vsel %vm187, %v165, 0
  %v234 = vsel %vm187, %v166, 0
  %236 = vmatprep.subr.bf16.mxu0 %v180
  %237 = vmatpush1.bf16.msra.mxu0 %v179
  %238 = vmatprep.subr.bf16.mxu0 %v182
  %239 = vmatpush1.bf16.msra.mxu0 %v181
  %240 = vmatprep.subr.bf16.mxu0 0
  %241 = vmatpush1.bf16.msra.mxu0 0
  %242 = vmatprep.subr.bf16.mxu0 0
  %243 = vmatpush1.bf16.msra.mxu0 0
  %244 = vmatprep.subr.bf16.mxu0 0
  %245 = vmatpush1.bf16.msra.mxu0 0
  %246 = vmatprep.subr.bf16.mxu0 0
  %247 = vmatpush1.bf16.msra.mxu0 0
  %248 = vmatprep.subr.bf16.mxu0 0
  %249 = vmatpush1.bf16.msra.mxu0 0
  %250 = vmatprep.subr.bf16.mxu0 0
  %251 = vmatpush1.bf16.msra.mxu0 0
  %252 = vmatprep.subr.bf16.mxu0 0
  %253 = vmatpush1.bf16.msra.mxu0 0
  %254 = vmatprep.subr.bf16.mxu0 0
  %255 = vmatpush1.bf16.msra.mxu0 0
  %256 = vmatprep.subr.bf16.mxu0 0
  %257 = vmatpush1.bf16.msra.mxu0 0
  %258 = vmatprep.subr.bf16.mxu0 0
  %259 = vmatpush1.bf16.msra.mxu0 0
  %260 = vmatprep.subr.bf16.mxu0 0
  %261 = vmatpush1.bf16.msra.mxu0 0
  %262 = vmatprep.subr.bf16.mxu0 0
  %263 = vmatpush1.bf16.msra.mxu0 0
  %264 = vmatprep.subr.bf16.mxu0 0
  %265 = vmatpush1.bf16.msra.mxu0 0
  %266 = vmatprep.subr.bf16.mxu0 0
  %267 = vmatpush1.bf16.msra.mxu0 0
  %268 = vmatprep.mubr.bf16.mxu0 0
  %269 = vmatmul.mubr.bf16.gmra.mrb[0].mxu0 %v189
  %v270 = vpop.f32.mrb[0].mxu0
  %v271 = vadd.f32 %v80, %v270
  %v272 = vpop.f32.mrb[0].mxu0
  %v273 = vadd.f32 %v84, %v272
  %v274 = vpop.f32.mrb[0].mxu0
  %v275 = vadd.f32 %v80, %v274
  %v276 = vpop.f32.mrb[0].mxu0
  %v277 = vadd.f32 %v84, %v276
  %278 = vmatprep.mubr.bf16.mxu0 0
  %279 = vmatmul.mubr.bf16.gmra.mrb[0].mxu0 %v192
  %v280 = vpop.f32.mrb[0].mxu0
  %v281 = vadd.f32 %v80, %v280
  %v282 = vpop.f32.mrb[0].mxu0
  %v283 = vadd.f32 %v84, %v282
  %v284 = vpop.f32.mrb[0].mxu0
  %v285 = vadd.f32 %v80, %v284
  %v286 = vpop.f32.mrb[0].mxu0
  %v287 = vadd.f32 %v84, %v286
  %288 = vmatprep.mubr.bf16.mxu0 0
  %289 = vmatmul.mubr.bf16.gmra.mrb[0].mxu0 %v195
  %v290 = vpop.f32.mrb[0].mxu0
  %v291 = vadd.f32 %v80, %v290
  %v292 = vpop.f32.mrb[0].mxu0
  %v293 = vadd.f32 %v84, %v292
  %v294 = vpop.f32.mrb[0].mxu0
  %v295 = vadd.f32 %v80, %v294
  %v296 = vpop.f32.mrb[0].mxu0
  %v297 = vadd.f32 %v84, %v296
  %298 = vmatprep.mubr.bf16.mxu0 0
  %299 = vmatmul.mubr.bf16.gmra.mrb[0].mxu0 %v198
  %v300 = vpop.f32.mrb[0].mxu0
  %v301 = vadd.f32 %v80, %v300
  %v302 = vpop.f32.mrb[0].mxu0
  %v303 = vadd.f32 %v84, %v302
  %v304 = vpop.f32.mrb[0].mxu0
  %v305 = vadd.f32 %v80, %v304
  %v306 = vpop.f32.mrb[0].mxu0
  %v307 = vadd.f32 %v84, %v306
  %308 = vmatprep.mubr.bf16.mxu0 0
  %309 = vmatmul.mubr.bf16.gmra.mrb[0].mxu0 %v201
  %v310 = vpop.f32.mrb[0].mxu0
  %v311 = vadd.f32 %v80, %v310
  %v312 = vpop.f32.mrb[0].mxu0
  %v313 = vadd.f32 %v84, %v312
  %v314 = vpop.f32.mrb[0].mxu0
  %v315 = vadd.f32 %v80, %v314
  %v316 = vpop.f32.mrb[0].mxu0
  %v317 = vadd.f32 %v84, %v316
  %318 = vmatprep.mubr.bf16.mxu0 0
  %319 = vmatmul.mubr.bf16.gmra.mrb[0].mxu0 %v204
  %v320 = vpop.f32.mrb[0].mxu0
  %v321 = vadd.f32 %v80, %v320
  %v322 = vpop.f32.mrb[0].mxu0
  %v323 = vadd.f32 %v84, %v322
  %v324 = vpop.f32.mrb[0].mxu0
  %v325 = vadd.f32 %v80, %v324
  %v326 = vpop.f32.mrb[0].mxu0
  %v327 = vadd.f32 %v84, %v326
  %328 = vmatprep.mubr.bf16.mxu0 0
  %329 = vmatmul.mubr.bf16.gmra.mrb[0].mxu0 %v207
  %v330 = vpop.f32.mrb[0].mxu0
  %v331 = vadd.f32 %v80, %v330
  %v332 = vpop.f32.mrb[0].mxu0
  %v333 = vadd.f32 %v84, %v332
  %v334 = vpop.f32.mrb[0].mxu0
  %v335 = vadd.f32 %v80, %v334
  %v336 = vpop.f32.mrb[0].mxu0
  %v337 = vadd.f32 %v84, %v336
  %338 = vmatprep.mubr.bf16.mxu0 0
  %339 = vmatmul.mubr.bf16.gmra.mrb[0].mxu0 %v210
  %v340 = vpop.f32.mrb[0].mxu0
  %v341 = vadd.f32 %v80, %v340
  %v342 = vpop.f32.mrb[0].mxu0
  %v343 = vadd.f32 %v84, %v342
  %v344 = vpop.f32.mrb[0].mxu0
  %v345 = vadd.f32 %v80, %v344
  %v346 = vpop.f32.mrb[0].mxu0
  %v347 = vadd.f32 %v84, %v346
  %348 = vmatprep.mubr.bf16.mxu0 0
  %349 = vmatmul.mubr.bf16.gmra.mrb[0].mxu0 %v213
  %v350 = vpop.f32.mrb[0].mxu0
  %v351 = vadd.f32 %v80, %v350
  %v352 = vpop.f32.mrb[0].mxu0
  %v353 = vadd.f32 %v84, %v352
  %v354 = vpop.f32.mrb[0].mxu0
  %v355 = vadd.f32 %v80, %v354
  %v356 = vpop.f32.mrb[0].mxu0
  %v357 = vadd.f32 %v84, %v356
  %358 = vmatprep.mubr.bf16.mxu0 0
  %359 = vmatmul.mubr.bf16.gmra.mrb[0].mxu0 %v216
  %v360 = vpop.f32.mrb[0].mxu0
  %v361 = vadd.f32 %v80, %v360
  %v362 = vpop.f32.mrb[0].mxu0
  %v363 = vadd.f32 %v84, %v362
  %v364 = vpop.f32.mrb[0].mxu0
  %v365 = vadd.f32 %v80, %v364
  %v366 = vpop.f32.mrb[0].mxu0
  %v367 = vadd.f32 %v84, %v366
  %368 = vmatprep.mubr.bf16.mxu0 0
  %369 = vmatmul.mubr.bf16.gmra.mrb[0].mxu0 %v219
  %v370 = vpop.f32.mrb[0].mxu0
  %v371 = vadd.f32 %v80, %v370
  %v372 = vpop.f32.mrb[0].mxu0
  %v373 = vadd.f32 %v84, %v372
  %v374 = vpop.f32.mrb[0].mxu0
  %v375 = vadd.f32 %v80, %v374
  %v376 = vpop.f32.mrb[0].mxu0
  %v377 = vadd.f32 %v84, %v376
  %378 = vmatprep.mubr.bf16.mxu0 0
  %379 = vmatmul.mubr.bf16.gmra.mrb[0].mxu0 %v222
  %v380 = vpop.f32.mrb[0].mxu0
  %v381 = vadd.f32 %v80, %v380
  %v382 = vpop.f32.mrb[0].mxu0
  %v383 = vadd.f32 %v84, %v382
  %v384 = vpop.f32.mrb[0].mxu0
  %v385 = vadd.f32 %v80, %v384
  %v386 = vpop.f32.mrb[0].mxu0
  %v387 = vadd.f32 %v84, %v386
  %388 = vmatprep.mubr.bf16.mxu0 0
  %389 = vmatmul.mubr.bf16.gmra.mrb[0].mxu0 %v225
  %v390 = vpop.f32.mrb[0].mxu0
  %v391 = vadd.f32 %v80, %v390
  %v392 = vpop.f32.mrb[0].mxu0
  %v393 = vadd.f32 %v84, %v392
  %v394 = vpop.f32.mrb[0].mxu0
  %v395 = vadd.f32 %v80, %v394
  %v396 = vpop.f32.mrb[0].mxu0
  %v397 = vadd.f32 %v84, %v396
  %398 = vmatprep.mubr.bf16.mxu0 0
  %399 = vmatmul.mubr.bf16.gmra.mrb[0].mxu0 %v228
  %v400 = vpop.f32.mrb[0].mxu0
  %v401 = vadd.f32 %v80, %v400
  %v402 = vpop.f32.mrb[0].mxu0
  %v403 = vadd.f32 %v84, %v402
  %v404 = vpop.f32.mrb[0].mxu0
  %v405 = vadd.f32 %v80, %v404
  %v406 = vpop.f32.mrb[0].mxu0
  %v407 = vadd.f32 %v84, %v406
  %408 = vmatprep.mubr.bf16.mxu0 0
  %409 = vmatmul.mubr.bf16.gmra.mrb[0].mxu0 %v231
  %v410 = vpop.f32.mrb[0].mxu0
  %v411 = vadd.f32 %v80, %v410
  %v412 = vpop.f32.mrb[0].mxu0
  %v413 = vadd.f32 %v84, %v412
  %v414 = vpop.f32.mrb[0].mxu0
  %v415 = vadd.f32 %v80, %v414
  %v416 = vpop.f32.mrb[0].mxu0
  %v417 = vadd.f32 %v84, %v416
  %418 = vmatprep.mubr.bf16.mxu0 0
  %419 = vmatmul.mubr.bf16.gmra.mrb[0].mxu0 %v234
  %v420 = vpop.f32.mrb[0].mxu0
  %v421 = vadd.f32 %v80, %v420
  %v422 = vpop.f32.mrb[0].mxu0
  %v423 = vadd.f32 %v84, %v422
  %v424 = vpop.f32.mrb[0].mxu0
  %v425 = vadd.f32 %v80, %v424
  %v426 = vpop.f32.mrb[0].mxu0
  %v427 = vadd.f32 %v84, %v426
  %428 = vdwg.mxu0
  %v429 = vmax.f32 %v271, 0.0
  %v430 = vmax.f32 %v273, 0.0
  %v431 = vmax.f32 %v275, 0.0
  %v432 = vmax.f32 %v277, 0.0
  %v433 = vmax.f32 %v281, 0.0
  %v434 = vmax.f32 %v283, 0.0
  %v435 = vmax.f32 %v285, 0.0
  %v436 = vmax.f32 %v287, 0.0
  %v437 = vmax.f32 %v291, 0.0
  %v438 = vmax.f32 %v293, 0.0
  %v439 = vmax.f32 %v295, 0.0
  %v440 = vmax.f32 %v297, 0.0
  %v441 = vmax.f32 %v301, 0.0
  %v442 = vmax.f32 %v303, 0.0
  %v443 = vmax.f32 %v305, 0.0
  %v444 = vmax.f32 %v307, 0.0
  %v445 = vmax.f32 %v311, 0.0
  %v446 = vmax.f32 %v313, 0.0
  %v447 = vmax.f32 %v315, 0.0
  %v448 = vmax.f32 %v317, 0.0
  %v449 = vmax.f32 %v321, 0.0
  %v450 = vmax.f32 %v323, 0.0
  %v451 = vmax.f32 %v325, 0.0
  %v452 = vmax.f32 %v327, 0.0
  %v453 = vmax.f32 %v331, 0.0
  %v454 = vmax.f32 %v333, 0.0
  %v455 = vmax.f32 %v335, 0.0
  %v456 = vmax.f32 %v337, 0.0
  %v457 = vmax.f32 %v341, 0.0
  %v458 = vmax.f32 %v343, 0.0
  %v459 = vmax.f32 %v345, 0.0
  %v460 = vmax.f32 %v347, 0.0
  %v461 = vmax.f32 %v351, 0.0
  %v462 = vmax.f32 %v353, 0.0
  %v463 = vmax.f32 %v355, 0.0
  %v464 = vmax.f32 %v357, 0.0
  %v465 = vmax.f32 %v361, 0.0
  %v466 = vmax.f32 %v363, 0.0
  %v467 = vmax.f32 %v365, 0.0
  %v468 = vmax.f32 %v367, 0.0
  %v469 = vmax.f32 %v371, 0.0
  %v470 = vmax.f32 %v373, 0.0
  %v471 = vmax.f32 %v375, 0.0
  %v472 = vmax.f32 %v377, 0.0
  %v473 = vmax.f32 %v381, 0.0
  %v474 = vmax.f32 %v383, 0.0
  %v475 = vmax.f32 %v385, 0.0
  %v476 = vmax.f32 %v387, 0.0
  %v477 = vmax.f32 %v391, 0.0
  %v478 = vmax.f32 %v393, 0.0
  %v479 = vmax.f32 %v395, 0.0
  %v480 = vmax.f32 %v397, 0.0
  %v481 = vmax.f32 %v401, 0.0
  %v482 = vmax.f32 %v403, 0.0
  %v483 = vmax.f32 %v405, 0.0
  %v484 = vmax.f32 %v407, 0.0
  %v485 = vmax.f32 %v411, 0.0
  %v486 = vmax.f32 %v413, 0.0
  %v487 = vmax.f32 %v415, 0.0
  %v488 = vmax.f32 %v417, 0.0
  %v489 = vmax.f32 %v421, 0.0
  %v490 = vmax.f32 %v423, 0.0
  %v491 = vmax.f32 %v425, 0.0
  %v492 = vmax.f32 %v427, 0.0
  %v493 = vpack.c.bf16 %v431, %v429
  %v494 = vpack.c.bf16 %v435, %v433
  %v495 = vpack.c.bf16 %v439, %v437
  %v496 = vpack.c.bf16 %v443, %v441
  %v497 = vpack.c.bf16 %v447, %v445
  %v498 = vpack.c.bf16 %v451, %v449
  %v499 = vpack.c.bf16 %v455, %v453
  %v500 = vpack.c.bf16 %v459, %v457
  %v501 = vpack.c.bf16 %v463, %v461
  %v502 = vpack.c.bf16 %v467, %v465
  %v503 = vpack.c.bf16 %v471, %v469
  %v504 = vpack.c.bf16 %v475, %v473
  %v505 = vpack.c.bf16 %v479, %v477
  %v506 = vpack.c.bf16 %v483, %v481
  %v507 = vpack.c.bf16 %v487, %v485
  %v508 = vpack.c.bf16 %v491, %v489
  %v509 = vpack.c.bf16 %v432, %v430
  %v510 = vpack.c.bf16 %v436, %v434
  %v511 = vpack.c.bf16 %v440, %v438
  %v512 = vpack.c.bf16 %v444, %v442
  %v513 = vpack.c.bf16 %v448, %v446
  %v514 = vpack.c.bf16 %v452, %v450
  %v515 = vpack.c.bf16 %v456, %v454
  %v516 = vpack.c.bf16 %v460, %v458
  %v517 = vpack.c.bf16 %v464, %v462
  %v518 = vpack.c.bf16 %v468, %v466
  %v519 = vpack.c.bf16 %v472, %v470
  %v520 = vpack.c.bf16 %v476, %v474
  %v521 = vpack.c.bf16 %v480, %v478
  %v522 = vpack.c.bf16 %v484, %v482
  %v523 = vpack.c.bf16 %v488, %v486
  %v524 = vpack.c.bf16 %v492, %v490
  %v525 = vld [vmem:[%s3] sm:$0xf]
  %v526 = vld [vmem:[%s3 + $0x4] sm:$0xf]
  %v527 = vld [vmem:[%s3 + $0x8] sm:$0xf]
  %v528 = vld [vmem:[%s3 + $0xc] sm:$0xf]
  %v529 = vld [vmem:[%s3 + $0x10] sm:$0xf]
  %v530 = vld [vmem:[%s3 + $0x14] sm:$0xf]
  %v531 = vld [vmem:[%s3 + $0x18] sm:$0xf]
  %v532 = vld [vmem:[%s3 + $0x1c] sm:$0xf]
  %v533 = vld [vmem:[%s3 + $0x20] sm:$0xf]
  %v534 = vld [vmem:[%s3 + $0x24] sm:$0xf]
  %v535 = vld [vmem:[%s3 + $0x28] sm:$0xf]
  %v536 = vld [vmem:[%s3 + $0x2c] sm:$0xf]
  %v537 = vld [vmem:[%s3 + $0x30] sm:$0xf]
  %v538 = vld [vmem:[%s3 + $0x34] sm:$0xf]
  %v539 = vld [vmem:[%s3 + $0x38] sm:$0xf]
  %v540 = vld [vmem:[%s3 + $0x3c] sm:$0xf]
  %v541 = vld [vmem:[%s4] sm:$0x1]
  %v543 = vlaneseq
  %v544 = vshrl.u32 %v543, 7
  %v545 = vsub.s32 0, %v544
  %v546 = vrot.slane %v541, %v545
  %v564 = vunpack.c.l.b16 %v525
  %v565 = vunpack.c.l.b16 %v526
  %v566 = vunpack.c.l.b16 %v527
  %v567 = vunpack.c.l.b16 %v528
  %v568 = vunpack.c.l.b16 %v529
  %v569 = vunpack.c.l.b16 %v530
  %v570 = vunpack.c.l.b16 %v531
  %v571 = vunpack.c.l.b16 %v532
  %v572 = vunpack.c.l.b16 %v533
  %v573 = vunpack.c.l.b16 %v534
  %v574 = vunpack.c.l.b16 %v535
  %v575 = vunpack.c.l.b16 %v536
  %v576 = vunpack.c.l.b16 %v537
  %v577 = vunpack.c.l.b16 %v538
  %v578 = vunpack.c.l.b16 %v539
  %v579 = vunpack.c.l.b16 %v540
  %v580 = vpack.c.b16 %v565, %v564
  %v581 = vpack.c.b16 %v567, %v566
  %v582 = vpack.c.b16 %v569, %v568
  %v583 = vpack.c.b16 %v571, %v570
  %v584 = vpack.c.b16 %v573, %v572
  %v585 = vpack.c.b16 %v575, %v574
  %v586 = vpack.c.b16 %v577, %v576
  %v587 = vpack.c.b16 %v579, %v578
  %596 = vmatprep.subr.bf16.mxu0 0
  %597 = vmatpush1.bf16.msra.mxu0 %v580
  %598 = vmatprep.subr.bf16.mxu0 0
  %599 = vmatpush1.bf16.msra.mxu0 %v581
  %600 = vmatprep.subr.bf16.mxu0 0
  %601 = vmatpush1.bf16.msra.mxu0 %v582
  %602 = vmatprep.subr.bf16.mxu0 0
  %603 = vmatpush1.bf16.msra.mxu0 %v583
  %604 = vmatprep.subr.bf16.mxu0 0
  %605 = vmatpush1.bf16.msra.mxu0 %v584
  %606 = vmatprep.subr.bf16.mxu0 0
  %607 = vmatpush1.bf16.msra.mxu0 %v585
  %608 = vmatprep.subr.bf16.mxu0 0
  %609 = vmatpush1.bf16.msra.mxu0 %v586
  %610 = vmatprep.subr.bf16.mxu0 0
  %611 = vmatpush1.bf16.msra.mxu0 %v587
  %612 = vmatprep.subr.bf16.mxu0 0
  %613 = vmatpush1.bf16.msra.mxu0 0
  %614 = vmatprep.subr.bf16.mxu0 0
  %615 = vmatpush1.bf16.msra.mxu0 0
  %616 = vmatprep.subr.bf16.mxu0 0
  %617 = vmatpush1.bf16.msra.mxu0 0
  %618 = vmatprep.subr.bf16.mxu0 0
  %619 = vmatpush1.bf16.msra.mxu0 0
  %620 = vmatprep.subr.bf16.mxu0 0
  %621 = vmatpush1.bf16.msra.mxu0 0
  %622 = vmatprep.subr.bf16.mxu0 0
  %623 = vmatpush1.bf16.msra.mxu0 0
  %624 = vmatprep.subr.bf16.mxu0 0
  %625 = vmatpush1.bf16.msra.mxu0 0
  %626 = vmatprep.subr.bf16.mxu0 0
  %627 = vmatpush1.bf16.msra.mxu0 0
  %628 = vmatprep.mubr.bf16.mxu0 0
  %629 = vmatmul.mubr.bf16.gmra.mrb[0].mxu0 %v493
  %v630 = vpop.f32.mrb[0].mxu0
  %v631 = vadd.f32 %v546, %v630
  %v632 = vpop.f32.mrb[0].mxu0
  %v633 = vpop.f32.mrb[0].mxu0
  %v634 = vadd.f32 %v546, %v633
  %v635 = vpop.f32.mrb[0].mxu0
  %636 = vmatprep.mubr.bf16.mxu0 0
  %637 = vmatmul.mubr.bf16.gmra.mrb[0].mxu0 %v494
  %v638 = vpop.f32.mrb[0].mxu0
  %v639 = vadd.f32 %v546, %v638
  %v640 = vpop.f32.mrb[0].mxu0
  %v641 = vpop.f32.mrb[0].mxu0
  %v642 = vadd.f32 %v546, %v641
  %v643 = vpop.f32.mrb[0].mxu0
  %644 = vmatprep.mubr.bf16.mxu0 0
  %645 = vmatmul.mubr.bf16.gmra.mrb[0].mxu0 %v495
  %v646 = vpop.f32.mrb[0].mxu0
  %v647 = vadd.f32 %v546, %v646
  %v648 = vpop.f32.mrb[0].mxu0
  %v649 = vpop.f32.mrb[0].mxu0
  %v650 = vadd.f32 %v546, %v649
  %v651 = vpop.f32.mrb[0].mxu0
  %652 = vmatprep.mubr.bf16.mxu0 0
  %653 = vmatmul.mubr.bf16.gmra.mrb[0].mxu0 %v496
  %v654 = vpop.f32.mrb[0].mxu0
  %v655 = vadd.f32 %v546, %v654
  %v656 = vpop.f32.mrb[0].mxu0
  %v657 = vpop.f32.mrb[0].mxu0
  %v658 = vadd.f32 %v546, %v657
  %v659 = vpop.f32.mrb[0].mxu0
  %660 = vmatprep.mubr.bf16.mxu0 0
  %661 = vmatmul.mubr.bf16.gmra.mrb[0].mxu0 %v497
  %v662 = vpop.f32.mrb[0].mxu0
  %v663 = vadd.f32 %v546, %v662
  %v664 = vpop.f32.mrb[0].mxu0
  %v665 = vpop.f32.mrb[0].mxu0
  %v666 = vadd.f32 %v546, %v665
  %v667 = vpop.f32.mrb[0].mxu0
  %668 = vmatprep.mubr.bf16.mxu0 0
  %669 = vmatmul.mubr.bf16.gmra.mrb[0].mxu0 %v498
  %v670 = vpop.f32.mrb[0].mxu0
  %v671 = vadd.f32 %v546, %v670
  %v672 = vpop.f32.mrb[0].mxu0
  %v673 = vpop.f32.mrb[0].mxu0
  %v674 = vadd.f32 %v546, %v673
  %v675 = vpop.f32.mrb[0].mxu0
  %676 = vmatprep.mubr.bf16.mxu0 0
  %677 = vmatmul.mubr.bf16.gmra.mrb[0].mxu0 %v499
  %v678 = vpop.f32.mrb[0].mxu0
  %v679 = vadd.f32 %v546, %v678
  %v680 = vpop.f32.mrb[0].mxu0
  %v681 = vpop.f32.mrb[0].mxu0
  %v682 = vadd.f32 %v546, %v681
  %v683 = vpop.f32.mrb[0].mxu0
  %684 = vmatprep.mubr.bf16.mxu0 0
  %685 = vmatmul.mubr.bf16.gmra.mrb[0].mxu0 %v500
  %v686 = vpop.f32.mrb[0].mxu0
  %v687 = vadd.f32 %v546, %v686
  %v688 = vpop.f32.mrb[0].mxu0
  %v689 = vpop.f32.mrb[0].mxu0
  %v690 = vadd.f32 %v546, %v689
  %v691 = vpop.f32.mrb[0].mxu0
  %692 = vmatprep.mubr.bf16.mxu0 0
  %693 = vmatmul.mubr.bf16.gmra.mrb[0].mxu0 %v501
  %v694 = vpop.f32.mrb[0].mxu0
  %v695 = vadd.f32 %v546, %v694
  %v696 = vpop.f32.mrb[0].mxu0
  %v697 = vpop.f32.mrb[0].mxu0
  %v698 = vadd.f32 %v546, %v697
  %v699 = vpop.f32.mrb[0].mxu0
  %700 = vmatprep.mubr.bf16.mxu0 0
  %701 = vmatmul.mubr.bf16.gmra.mrb[0].mxu0 %v502
  %v702 = vpop.f32.mrb[0].mxu0
  %v703 = vadd.f32 %v546, %v702
  %v704 = vpop.f32.mrb[0].mxu0
  %v705 = vpop.f32.mrb[0].mxu0
  %v706 = vadd.f32 %v546, %v705
  %v707 = vpop.f32.mrb[0].mxu0
  %708 = vmatprep.mubr.bf16.mxu0 0
  %709 = vmatmul.mubr.bf16.gmra.mrb[0].mxu0 %v503
  %v710 = vpop.f32.mrb[0].mxu0
  %v711 = vadd.f32 %v546, %v710
  %v712 = vpop.f32.mrb[0].mxu0
  %v713 = vpop.f32.mrb[0].mxu0
  %v714 = vadd.f32 %v546, %v713
  %v715 = vpop.f32.mrb[0].mxu0
  %716 = vmatprep.mubr.bf16.mxu0 0
  %717 = vmatmul.mubr.bf16.gmra.mrb[0].mxu0 %v504
  %v718 = vpop.f32.mrb[0].mxu0
  %v719 = vadd.f32 %v546, %v718
  %v720 = vpop.f32.mrb[0].mxu0
  %v721 = vpop.f32.mrb[0].mxu0
  %v722 = vadd.f32 %v546, %v721
  %v723 = vpop.f32.mrb[0].mxu0
  %724 = vmatprep.mubr.bf16.mxu0 0
  %725 = vmatmul.mubr.bf16.gmra.mrb[0].mxu0 %v505
  %v726 = vpop.f32.mrb[0].mxu0
  %v727 = vadd.f32 %v546, %v726
  %v728 = vpop.f32.mrb[0].mxu0
  %v729 = vpop.f32.mrb[0].mxu0
  %v730 = vadd.f32 %v546, %v729
  %v731 = vpop.f32.mrb[0].mxu0
  %732 = vmatprep.mubr.bf16.mxu0 0
  %733 = vmatmul.mubr.bf16.gmra.mrb[0].mxu0 %v506
  %v734 = vpop.f32.mrb[0].mxu0
  %v735 = vadd.f32 %v546, %v734
  %v736 = vpop.f32.mrb[0].mxu0
  %v737 = vpop.f32.mrb[0].mxu0
  %v738 = vadd.f32 %v546, %v737
  %v739 = vpop.f32.mrb[0].mxu0
  %740 = vmatprep.mubr.bf16.mxu0 0
  %741 = vmatmul.mubr.bf16.gmra.mrb[0].mxu0 %v507
  %v742 = vpop.f32.mrb[0].mxu0
  %v743 = vadd.f32 %v546, %v742
  %v744 = vpop.f32.mrb[0].mxu0
  %v745 = vpop.f32.mrb[0].mxu0
  %v746 = vadd.f32 %v546, %v745
  %v747 = vpop.f32.mrb[0].mxu0
  %748 = vmatprep.mubr.bf16.mxu0 0
  %749 = vmatmul.mubr.bf16.gmra.mrb[0].mxu0 %v508
  %v750 = vpop.f32.mrb[0].mxu0
  %v751 = vadd.f32 %v546, %v750
  %v752 = vpop.f32.mrb[0].mxu0
  %v753 = vpop.f32.mrb[0].mxu0
  %v754 = vadd.f32 %v546, %v753
  %v755 = vpop.f32.mrb[0].mxu0
  %756 = vdwg.mxu0
  %v757 = vmax.f32 %v631, 0.0
  %v758 = vmax.f32 %v634, 0.0
  %v759 = vmax.f32 %v639, 0.0
  %v760 = vmax.f32 %v642, 0.0
  %v761 = vmax.f32 %v647, 0.0
  %v762 = vmax.f32 %v650, 0.0
  %v763 = vmax.f32 %v655, 0.0
  %v764 = vmax.f32 %v658, 0.0
  %v765 = vmax.f32 %v663, 0.0
  %v766 = vmax.f32 %v666, 0.0
  %v767 = vmax.f32 %v671, 0.0
  %v768 = vmax.f32 %v674, 0.0
  %v769 = vmax.f32 %v679, 0.0
  %v770 = vmax.f32 %v682, 0.0
  %v771 = vmax.f32 %v687, 0.0
  %v772 = vmax.f32 %v690, 0.0
  %v773 = vmax.f32 %v695, 0.0
  %v774 = vmax.f32 %v698, 0.0
  %v775 = vmax.f32 %v703, 0.0
  %v776 = vmax.f32 %v706, 0.0
  %v777 = vmax.f32 %v711, 0.0
  %v778 = vmax.f32 %v714, 0.0
  %v779 = vmax.f32 %v719, 0.0
  %v780 = vmax.f32 %v722, 0.0
  %v781 = vmax.f32 %v727, 0.0
  %v782 = vmax.f32 %v730, 0.0
  %v783 = vmax.f32 %v735, 0.0
  %v784 = vmax.f32 %v738, 0.0
  %v785 = vmax.f32 %v743, 0.0
  %v786 = vmax.f32 %v746, 0.0
  %v787 = vmax.f32 %v751, 0.0
  %v788 = vmax.f32 %v754, 0.0
  %v789 = vld [vmem:[%s5] sm:$0xf]
  %v790 = vld [vmem:[%s5 + $0x4] sm:$0xf]
  %v791 = vld [vmem:[%s5 + $0x8] sm:$0xf]
  %v792 = vld [vmem:[%s5 + $0xc] sm:$0xf]
  %v793 = vld [vmem:[%s5 + $0x10] sm:$0xf]
  %v794 = vld [vmem:[%s5 + $0x14] sm:$0xf]
  %v795 = vld [vmem:[%s5 + $0x18] sm:$0xf]
  %v796 = vld [vmem:[%s5 + $0x1c] sm:$0xf]
  %v797 = vld [vmem:[%s5 + $0x20] sm:$0xf]
  %v798 = vld [vmem:[%s5 + $0x24] sm:$0xf]
  %v799 = vld [vmem:[%s5 + $0x28] sm:$0xf]
  %v800 = vld [vmem:[%s5 + $0x2c] sm:$0xf]
  %v801 = vld [vmem:[%s5 + $0x30] sm:$0xf]
  %v802 = vld [vmem:[%s5 + $0x34] sm:$0xf]
  %v803 = vld [vmem:[%s5 + $0x38] sm:$0xf]
  %v804 = vld [vmem:[%s5 + $0x3c] sm:$0xf]
  %v805 = vld [vmem:[%s6] sm:$0x1]
  %v807 = vlaneseq
  %v808 = vshrl.u32 %v807, 7
  %v809 = vsub.s32 0, %v808
  %v810 = vrot.slane %v805, %v809
  %v828 = vunpack.c.l.b16 %v789
  %v829 = vunpack.c.l.b16 %v790
  %v830 = vunpack.c.l.b16 %v791
  %v831 = vunpack.c.l.b16 %v792
  %v832 = vunpack.c.l.b16 %v793
  %v833 = vunpack.c.l.b16 %v794
  %v834 = vunpack.c.l.b16 %v795
  %v835 = vunpack.c.l.b16 %v796
  %v836 = vunpack.c.l.b16 %v797
  %v837 = vunpack.c.l.b16 %v798
  %v838 = vunpack.c.l.b16 %v799
  %v839 = vunpack.c.l.b16 %v800
  %v840 = vunpack.c.l.b16 %v801
  %v841 = vunpack.c.l.b16 %v802
  %v842 = vunpack.c.l.b16 %v803
  %v843 = vunpack.c.l.b16 %v804
  %v844 = vpack.c.b16 %v829, %v828
  %v845 = vpack.c.b16 %v831, %v830
  %v846 = vpack.c.b16 %v833, %v832
  %v847 = vpack.c.b16 %v835, %v834
  %v848 = vpack.c.b16 %v837, %v836
  %v849 = vpack.c.b16 %v839, %v838
  %v850 = vpack.c.b16 %v841, %v840
  %v851 = vpack.c.b16 %v843, %v842
  %860 = vmatprep.subr.bf16.mxu0 0
  %861 = vmatpush1.bf16.msra.mxu0 %v844
  %862 = vmatprep.subr.bf16.mxu0 0
  %863 = vmatpush1.bf16.msra.mxu0 %v845
  %864 = vmatprep.subr.bf16.mxu0 0
  %865 = vmatpush1.bf16.msra.mxu0 %v846
  %866 = vmatprep.subr.bf16.mxu0 0
  %867 = vmatpush1.bf16.msra.mxu0 %v847
  %868 = vmatprep.subr.bf16.mxu0 0
  %869 = vmatpush1.bf16.msra.mxu0 %v848
  %870 = vmatprep.subr.bf16.mxu0 0
  %871 = vmatpush1.bf16.msra.mxu0 %v849
  %872 = vmatprep.subr.bf16.mxu0 0
  %873 = vmatpush1.bf16.msra.mxu0 %v850
  %874 = vmatprep.subr.bf16.mxu0 0
  %875 = vmatpush1.bf16.msra.mxu0 %v851
  %876 = vmatprep.subr.bf16.mxu0 0
  %877 = vmatpush1.bf16.msra.mxu0 0
  %878 = vmatprep.subr.bf16.mxu0 0
  %879 = vmatpush1.bf16.msra.mxu0 0
  %880 = vmatprep.subr.bf16.mxu0 0
  %881 = vmatpush1.bf16.msra.mxu0 0
  %882 = vmatprep.subr.bf16.mxu0 0
  %883 = vmatpush1.bf16.msra.mxu0 0
  %884 = vmatprep.subr.bf16.mxu0 0
  %885 = vmatpush1.bf16.msra.mxu0 0
  %886 = vmatprep.subr.bf16.mxu0 0
  %887 = vmatpush1.bf16.msra.mxu0 0
  %888 = vmatprep.subr.bf16.mxu0 0
  %889 = vmatpush1.bf16.msra.mxu0 0
  %890 = vmatprep.subr.bf16.mxu0 0
  %891 = vmatpush1.bf16.msra.mxu0 0
  %892 = vmatprep.mubr.bf16.mxu0 0
  %893 = vmatmul.mubr.bf16.gmra.mrb[0].mxu0 %v509
  %v894 = vpop.f32.mrb[0].mxu0
  %v895 = vadd.f32 %v810, %v894
  %v896 = vpop.f32.mrb[0].mxu0
  %v897 = vpop.f32.mrb[0].mxu0
  %v898 = vadd.f32 %v810, %v897
  %v899 = vpop.f32.mrb[0].mxu0
  %900 = vmatprep.mubr.bf16.mxu0 0
  %901 = vmatmul.mubr.bf16.gmra.mrb[0].mxu0 %v510
  %v902 = vpop.f32.mrb[0].mxu0
  %v903 = vadd.f32 %v810, %v902
  %v904 = vpop.f32.mrb[0].mxu0
  %v905 = vpop.f32.mrb[0].mxu0
  %v906 = vadd.f32 %v810, %v905
  %v907 = vpop.f32.mrb[0].mxu0
  %908 = vmatprep.mubr.bf16.mxu0 0
  %909 = vmatmul.mubr.bf16.gmra.mrb[0].mxu0 %v511
  %v910 = vpop.f32.mrb[0].mxu0
  %v911 = vadd.f32 %v810, %v910
  %v912 = vpop.f32.mrb[0].mxu0
  %v913 = vpop.f32.mrb[0].mxu0
  %v914 = vadd.f32 %v810, %v913
  %v915 = vpop.f32.mrb[0].mxu0
  %916 = vmatprep.mubr.bf16.mxu0 0
  %917 = vmatmul.mubr.bf16.gmra.mrb[0].mxu0 %v512
  %v918 = vpop.f32.mrb[0].mxu0
  %v919 = vadd.f32 %v810, %v918
  %v920 = vpop.f32.mrb[0].mxu0
  %v921 = vpop.f32.mrb[0].mxu0
  %v922 = vadd.f32 %v810, %v921
  %v923 = vpop.f32.mrb[0].mxu0
  %924 = vmatprep.mubr.bf16.mxu0 0
  %925 = vmatmul.mubr.bf16.gmra.mrb[0].mxu0 %v513
  %v926 = vpop.f32.mrb[0].mxu0
  %v927 = vadd.f32 %v810, %v926
  %v928 = vpop.f32.mrb[0].mxu0
  %v929 = vpop.f32.mrb[0].mxu0
  %v930 = vadd.f32 %v810, %v929
  %v931 = vpop.f32.mrb[0].mxu0
  %932 = vmatprep.mubr.bf16.mxu0 0
  %933 = vmatmul.mubr.bf16.gmra.mrb[0].mxu0 %v514
  %v934 = vpop.f32.mrb[0].mxu0
  %v935 = vadd.f32 %v810, %v934
  %v936 = vpop.f32.mrb[0].mxu0
  %v937 = vpop.f32.mrb[0].mxu0
  %v938 = vadd.f32 %v810, %v937
  %v939 = vpop.f32.mrb[0].mxu0
  %940 = vmatprep.mubr.bf16.mxu0 0
  %941 = vmatmul.mubr.bf16.gmra.mrb[0].mxu0 %v515
  %v942 = vpop.f32.mrb[0].mxu0
  %v943 = vadd.f32 %v810, %v942
  %v944 = vpop.f32.mrb[0].mxu0
  %v945 = vpop.f32.mrb[0].mxu0
  %v946 = vadd.f32 %v810, %v945
  %v947 = vpop.f32.mrb[0].mxu0
  %948 = vmatprep.mubr.bf16.mxu0 0
  %949 = vmatmul.mubr.bf16.gmra.mrb[0].mxu0 %v516
  %v950 = vpop.f32.mrb[0].mxu0
  %v951 = vadd.f32 %v810, %v950
  %v952 = vpop.f32.mrb[0].mxu0
  %v953 = vpop.f32.mrb[0].mxu0
  %v954 = vadd.f32 %v810, %v953
  %v955 = vpop.f32.mrb[0].mxu0
  %956 = vmatprep.mubr.bf16.mxu0 0
  %957 = vmatmul.mubr.bf16.gmra.mrb[0].mxu0 %v517
  %v958 = vpop.f32.mrb[0].mxu0
  %v959 = vadd.f32 %v810, %v958
  %v960 = vpop.f32.mrb[0].mxu0
  %v961 = vpop.f32.mrb[0].mxu0
  %v962 = vadd.f32 %v810, %v961
  %v963 = vpop.f32.mrb[0].mxu0
  %964 = vmatprep.mubr.bf16.mxu0 0
  %965 = vmatmul.mubr.bf16.gmra.mrb[0].mxu0 %v518
  %v966 = vpop.f32.mrb[0].mxu0
  %v967 = vadd.f32 %v810, %v966
  %v968 = vpop.f32.mrb[0].mxu0
  %v969 = vpop.f32.mrb[0].mxu0
  %v970 = vadd.f32 %v810, %v969
  %v971 = vpop.f32.mrb[0].mxu0
  %972 = vmatprep.mubr.bf16.mxu0 0
  %973 = vmatmul.mubr.bf16.gmra.mrb[0].mxu0 %v519
  %v974 = vpop.f32.mrb[0].mxu0
  %v975 = vadd.f32 %v810, %v974
  %v976 = vpop.f32.mrb[0].mxu0
  %v977 = vpop.f32.mrb[0].mxu0
  %v978 = vadd.f32 %v810, %v977
  %v979 = vpop.f32.mrb[0].mxu0
  %980 = vmatprep.mubr.bf16.mxu0 0
  %981 = vmatmul.mubr.bf16.gmra.mrb[0].mxu0 %v520
  %v982 = vpop.f32.mrb[0].mxu0
  %v983 = vadd.f32 %v810, %v982
  %v984 = vpop.f32.mrb[0].mxu0
  %v985 = vpop.f32.mrb[0].mxu0
  %v986 = vadd.f32 %v810, %v985
  %v987 = vpop.f32.mrb[0].mxu0
  %988 = vmatprep.mubr.bf16.mxu0 0
  %989 = vmatmul.mubr.bf16.gmra.mrb[0].mxu0 %v521
  %v990 = vpop.f32.mrb[0].mxu0
  %v991 = vadd.f32 %v810, %v990
  %v992 = vpop.f32.mrb[0].mxu0
  %v993 = vpop.f32.mrb[0].mxu0
  %v994 = vadd.f32 %v810, %v993
  %v995 = vpop.f32.mrb[0].mxu0
  %996 = vmatprep.mubr.bf16.mxu0 0
  %997 = vmatmul.mubr.bf16.gmra.mrb[0].mxu0 %v522
  %v998 = vpop.f32.mrb[0].mxu0
  %v999 = vadd.f32 %v810, %v998
  %v1000 = vpop.f32.mrb[0].mxu0
  %v1001 = vpop.f32.mrb[0].mxu0
  %v1002 = vadd.f32 %v810, %v1001
  %v1003 = vpop.f32.mrb[0].mxu0
  %1004 = vmatprep.mubr.bf16.mxu0 0
  %1005 = vmatmul.mubr.bf16.gmra.mrb[0].mxu0 %v523
  %v1006 = vpop.f32.mrb[0].mxu0
  %v1007 = vadd.f32 %v810, %v1006
  %v1008 = vpop.f32.mrb[0].mxu0
  %v1009 = vpop.f32.mrb[0].mxu0
  %v1010 = vadd.f32 %v810, %v1009
  %v1011 = vpop.f32.mrb[0].mxu0
  %1012 = vmatprep.mubr.bf16.mxu0 0
  %1013 = vmatmul.mubr.bf16.gmra.mrb[0].mxu0 %v524
  %v1014 = vpop.f32.mrb[0].mxu0
  %v1015 = vadd.f32 %v810, %v1014
  %v1016 = vpop.f32.mrb[0].mxu0
  %v1017 = vpop.f32.mrb[0].mxu0
  %v1018 = vadd.f32 %v810, %v1017
  %v1019 = vpop.f32.mrb[0].mxu0
  %1020 = vdwg.mxu0
  %v1021 = vmax.f32 %v895, 0.0
  %v1022 = vmax.f32 %v898, 0.0
  %v1023 = vmax.f32 %v903, 0.0
  %v1024 = vmax.f32 %v906, 0.0
  %v1025 = vmax.f32 %v911, 0.0
  %v1026 = vmax.f32 %v914, 0.0
  %v1027 = vmax.f32 %v919, 0.0
  %v1028 = vmax.f32 %v922, 0.0
  %v1029 = vmax.f32 %v927, 0.0
  %v1030 = vmax.f32 %v930, 0.0
  %v1031 = vmax.f32 %v935, 0.0
  %v1032 = vmax.f32 %v938, 0.0
  %v1033 = vmax.f32 %v943, 0.0
  %v1034 = vmax.f32 %v946, 0.0
  %v1035 = vmax.f32 %v951, 0.0
  %v1036 = vmax.f32 %v954, 0.0
  %v1037 = vmax.f32 %v959, 0.0
  %v1038 = vmax.f32 %v962, 0.0
  %v1039 = vmax.f32 %v967, 0.0
  %v1040 = vmax.f32 %v970, 0.0
  %v1041 = vmax.f32 %v975, 0.0
  %v1042 = vmax.f32 %v978, 0.0
  %v1043 = vmax.f32 %v983, 0.0
  %v1044 = vmax.f32 %v986, 0.0
  %v1045 = vmax.f32 %v991, 0.0
  %v1046 = vmax.f32 %v994, 0.0
  %v1047 = vmax.f32 %v999, 0.0
  %v1048 = vmax.f32 %v1002, 0.0
  %v1049 = vmax.f32 %v1007, 0.0
  %v1050 = vmax.f32 %v1010, 0.0
  %v1051 = vmax.f32 %v1015, 0.0
  %v1052 = vmax.f32 %v1018, 0.0
  %v1053 = vpack.c.bf16 %v758, %v757
  %v1054 = vpack.c.bf16 %v760, %v759
  %v1055 = vpack.c.bf16 %v762, %v761
  %v1056 = vpack.c.bf16 %v764, %v763
  %v1057 = vpack.c.bf16 %v766, %v765
  %v1058 = vpack.c.bf16 %v768, %v767
  %v1059 = vpack.c.bf16 %v770, %v769
  %v1060 = vpack.c.bf16 %v772, %v771
  %v1061 = vpack.c.bf16 %v774, %v773
  %v1062 = vpack.c.bf16 %v776, %v775
  %v1063 = vpack.c.bf16 %v778, %v777
  %v1064 = vpack.c.bf16 %v780, %v779
  %v1065 = vpack.c.bf16 %v782, %v781
  %v1066 = vpack.c.bf16 %v784, %v783
  %v1067 = vpack.c.bf16 %v786, %v785
  %v1068 = vpack.c.bf16 %v788, %v787
  %v1069 = vld [vmem:[%s7] sm:$0xf]
  %v1070 = vld [vmem:[%s7 + $0x4] sm:$0xf]
  %v1071 = vld [vmem:[%s7 + $0x8] sm:$0xf]
  %v1072 = vld [vmem:[%s7 + $0xc] sm:$0xf]
  %v1073 = vld [vmem:[%s7 + $0x10] sm:$0xf]
  %v1074 = vld [vmem:[%s7 + $0x14] sm:$0xf]
  %v1075 = vld [vmem:[%s7 + $0x18] sm:$0xf]
  %v1076 = vld [vmem:[%s7 + $0x1c] sm:$0xf]
  %v1077 = vpack.c.bf16 %v1022, %v1021
  %v1078 = vpack.c.bf16 %v1024, %v1023
  %v1079 = vpack.c.bf16 %v1026, %v1025
  %v1080 = vpack.c.bf16 %v1028, %v1027
  %v1081 = vpack.c.bf16 %v1030, %v1029
  %v1082 = vpack.c.bf16 %v1032, %v1031
  %v1083 = vpack.c.bf16 %v1034, %v1033
  %v1084 = vpack.c.bf16 %v1036, %v1035
  %v1085 = vpack.c.bf16 %v1038, %v1037
  %v1086 = vpack.c.bf16 %v1040, %v1039
  %v1087 = vpack.c.bf16 %v1042, %v1041
  %v1088 = vpack.c.bf16 %v1044, %v1043
  %v1089 = vpack.c.bf16 %v1046, %v1045
  %v1090 = vpack.c.bf16 %v1048, %v1047
  %v1091 = vpack.c.bf16 %v1050, %v1049
  %v1092 = vpack.c.bf16 %v1052, %v1051
  %v1093 = vld [vmem:[%s8] sm:$0xf]
  %v1094 = vld [vmem:[%s8 + $0x4] sm:$0xf]
  %v1095 = vld [vmem:[%s8 + $0x8] sm:$0xf]
  %v1096 = vld [vmem:[%s8 + $0xc] sm:$0xf]
  %v1097 = vld [vmem:[%s8 + $0x10] sm:$0xf]
  %v1098 = vld [vmem:[%s8 + $0x14] sm:$0xf]
  %v1099 = vld [vmem:[%s8 + $0x18] sm:$0xf]
  %v1100 = vld [vmem:[%s8 + $0x1c] sm:$0xf]
  %v1109 = vunpack.c.l.b16 %v1093
  %v1110 = vunpack.c.l.b16 %v1094
  %v1111 = vunpack.c.l.b16 %v1095
  %v1112 = vunpack.c.l.b16 %v1096
  %v1113 = vunpack.c.l.b16 %v1097
  %v1114 = vunpack.c.l.b16 %v1098
  %v1115 = vunpack.c.l.b16 %v1099
  %v1116 = vunpack.c.l.b16 %v1100
  %v1117 = vpack.c.b16 %v1110, %v1109
  %v1118 = vpack.c.b16 %v1112, %v1111
  %v1119 = vpack.c.b16 %v1114, %v1113
  %v1120 = vpack.c.b16 %v1116, %v1115
  %vm1125 = vcmask 523264
  %v1127 = vsel %vm1125, %v1077, 0
  %v1130 = vsel %vm1125, %v1078, 0
  %v1133 = vsel %vm1125, %v1079, 0
  %v1136 = vsel %vm1125, %v1080, 0
  %v1139 = vsel %vm1125, %v1081, 0
  %v1142 = vsel %vm1125, %v1082, 0
  %v1145 = vsel %vm1125, %v1083, 0
  %v1148 = vsel %vm1125, %v1084, 0
  %v1151 = vsel %vm1125, %v1085, 0
  %v1154 = vsel %vm1125, %v1086, 0
  %v1157 = vsel %vm1125, %v1087, 0
  %v1160 = vsel %vm1125, %v1088, 0
  %v1163 = vsel %vm1125, %v1089, 0
  %v1166 = vsel %vm1125, %v1090, 0
  %v1169 = vsel %vm1125, %v1091, 0
  %v1172 = vsel %vm1125, %v1092, 0
  %1174 = vmatprep.subr.bf16.mxu0 0
  %1175 = vmatpush1.bf16.msra.mxu0 %v1117
  %1176 = vmatprep.subr.bf16.mxu0 0
  %1177 = vmatpush1.bf16.msra.mxu0 %v1118
  %1178 = vmatprep.subr.bf16.mxu0 0
  %1179 = vmatpush1.bf16.msra.mxu0 %v1119
  %1180 = vmatprep.subr.bf16.mxu0 0
  %1181 = vmatpush1.bf16.msra.mxu0 %v1120
  %1182 = vmatprep.subr.bf16.mxu0 0
  %1183 = vmatpush1.bf16.msra.mxu0 0
  %1184 = vmatprep.subr.bf16.mxu0 0
  %1185 = vmatpush1.bf16.msra.mxu0 0
  %1186 = vmatprep.subr.bf16.mxu0 0
  %1187 = vmatpush1.bf16.msra.mxu0 0
  %1188 = vmatprep.subr.bf16.mxu0 0
  %1189 = vmatpush1.bf16.msra.mxu0 0
  %1190 = vmatprep.subr.bf16.mxu0 0
  %1191 = vmatpush1.bf16.msra.mxu0 0
  %1192 = vmatprep.subr.bf16.mxu0 0
  %1193 = vmatpush1.bf16.msra.mxu0 0
  %1194 = vmatprep.subr.bf16.mxu0 0
  %1195 = vmatpush1.bf16.msra.mxu0 0
  %1196 = vmatprep.subr.bf16.mxu0 0
  %1197 = vmatpush1.bf16.msra.mxu0 0
  %1198 = vmatprep.subr.bf16.mxu0 0
  %1199 = vmatpush1.bf16.msra.mxu0 0
  %1200 = vmatprep.subr.bf16.mxu0 0
  %1201 = vmatpush1.bf16.msra.mxu0 0
  %1202 = vmatprep.subr.bf16.mxu0 0
  %1203 = vmatpush1.bf16.msra.mxu0 0
  %1204 = vmatprep.subr.bf16.mxu0 0
  %1205 = vmatpush1.bf16.msra.mxu0 0
  %1206 = vmatprep.mubr.bf16.mxu0 0
  %1207 = vmatmul.mubr.bf16.gmra.mrb[0].mxu0 %v1127
  %v1208 = vpop.f32.mrb[0].mxu0
  %v1209 = vadd.f32 0.0, %v1208
  %v1210 = vpop.f32.mrb[0].mxu0
  %v1211 = vpop.f32.mrb[0].mxu0
  %v1212 = vadd.f32 0.0, %v1211
  %v1213 = vpop.f32.mrb[0].mxu0
  %1214 = vmatprep.mubr.bf16.mxu0 0
  %1215 = vmatmul.mubr.bf16.gmra.mrb[0].mxu0 %v1130
  %v1216 = vpop.f32.mrb[0].mxu0
  %v1217 = vadd.f32 0.0, %v1216
  %v1218 = vpop.f32.mrb[0].mxu0
  %v1219 = vpop.f32.mrb[0].mxu0
  %v1220 = vadd.f32 0.0, %v1219
  %v1221 = vpop.f32.mrb[0].mxu0
  %1222 = vmatprep.mubr.bf16.mxu0 0
  %1223 = vmatmul.mubr.bf16.gmra.mrb[0].mxu0 %v1133
  %v1224 = vpop.f32.mrb[0].mxu0
  %v1225 = vadd.f32 0.0, %v1224
  %v1226 = vpop.f32.mrb[0].mxu0
  %v1227 = vpop.f32.mrb[0].mxu0
  %v1228 = vadd.f32 0.0, %v1227
  %v1229 = vpop.f32.mrb[0].mxu0
  %1230 = vmatprep.mubr.bf16.mxu0 0
  %1231 = vmatmul.mubr.bf16.gmra.mrb[0].mxu0 %v1136
  %v1232 = vpop.f32.mrb[0].mxu0
  %v1233 = vadd.f32 0.0, %v1232
  %v1234 = vpop.f32.mrb[0].mxu0
  %v1235 = vpop.f32.mrb[0].mxu0
  %v1236 = vadd.f32 0.0, %v1235
  %v1237 = vpop.f32.mrb[0].mxu0
  %1238 = vmatprep.mubr.bf16.mxu0 0
  %1239 = vmatmul.mubr.bf16.gmra.mrb[0].mxu0 %v1139
  %v1240 = vpop.f32.mrb[0].mxu0
  %v1241 = vadd.f32 0.0, %v1240
  %v1242 = vpop.f32.mrb[0].mxu0
  %v1243 = vpop.f32.mrb[0].mxu0
  %v1244 = vadd.f32 0.0, %v1243
  %v1245 = vpop.f32.mrb[0].mxu0
  %1246 = vmatprep.mubr.bf16.mxu0 0
  %1247 = vmatmul.mubr.bf16.gmra.mrb[0].mxu0 %v1142
  %v1248 = vpop.f32.mrb[0].mxu0
  %v1249 = vadd.f32 0.0, %v1248
  %v1250 = vpop.f32.mrb[0].mxu0
  %v1251 = vpop.f32.mrb[0].mxu0
  %v1252 = vadd.f32 0.0, %v1251
  %v1253 = vpop.f32.mrb[0].mxu0
  %1254 = vmatprep.mubr.bf16.mxu0 0
  %1255 = vmatmul.mubr.bf16.gmra.mrb[0].mxu0 %v1145
  %v1256 = vpop.f32.mrb[0].mxu0
  %v1257 = vadd.f32 0.0, %v1256
  %v1258 = vpop.f32.mrb[0].mxu0
  %v1259 = vpop.f32.mrb[0].mxu0
  %v1260 = vadd.f32 0.0, %v1259
  %v1261 = vpop.f32.mrb[0].mxu0
  %1262 = vmatprep.mubr.bf16.mxu0 0
  %1263 = vmatmul.mubr.bf16.gmra.mrb[0].mxu0 %v1148
  %v1264 = vpop.f32.mrb[0].mxu0
  %v1265 = vadd.f32 0.0, %v1264
  %v1266 = vpop.f32.mrb[0].mxu0
  %v1267 = vpop.f32.mrb[0].mxu0
  %v1268 = vadd.f32 0.0, %v1267
  %v1269 = vpop.f32.mrb[0].mxu0
  %1270 = vmatprep.mubr.bf16.mxu0 0
  %1271 = vmatmul.mubr.bf16.gmra.mrb[0].mxu0 %v1151
  %v1272 = vpop.f32.mrb[0].mxu0
  %v1273 = vadd.f32 0.0, %v1272
  %v1274 = vpop.f32.mrb[0].mxu0
  %v1275 = vpop.f32.mrb[0].mxu0
  %v1276 = vadd.f32 0.0, %v1275
  %v1277 = vpop.f32.mrb[0].mxu0
  %1278 = vmatprep.mubr.bf16.mxu0 0
  %1279 = vmatmul.mubr.bf16.gmra.mrb[0].mxu0 %v1154
  %v1280 = vpop.f32.mrb[0].mxu0
  %v1281 = vadd.f32 0.0, %v1280
  %v1282 = vpop.f32.mrb[0].mxu0
  %v1283 = vpop.f32.mrb[0].mxu0
  %v1284 = vadd.f32 0.0, %v1283
  %v1285 = vpop.f32.mrb[0].mxu0
  %1286 = vmatprep.mubr.bf16.mxu0 0
  %1287 = vmatmul.mubr.bf16.gmra.mrb[0].mxu0 %v1157
  %v1288 = vpop.f32.mrb[0].mxu0
  %v1289 = vadd.f32 0.0, %v1288
  %v1290 = vpop.f32.mrb[0].mxu0
  %v1291 = vpop.f32.mrb[0].mxu0
  %v1292 = vadd.f32 0.0, %v1291
  %v1293 = vpop.f32.mrb[0].mxu0
  %1294 = vmatprep.mubr.bf16.mxu0 0
  %1295 = vmatmul.mubr.bf16.gmra.mrb[0].mxu0 %v1160
  %v1296 = vpop.f32.mrb[0].mxu0
  %v1297 = vadd.f32 0.0, %v1296
  %v1298 = vpop.f32.mrb[0].mxu0
  %v1299 = vpop.f32.mrb[0].mxu0
  %v1300 = vadd.f32 0.0, %v1299
  %v1301 = vpop.f32.mrb[0].mxu0
  %1302 = vmatprep.mubr.bf16.mxu0 0
  %1303 = vmatmul.mubr.bf16.gmra.mrb[0].mxu0 %v1163
  %v1304 = vpop.f32.mrb[0].mxu0
  %v1305 = vadd.f32 0.0, %v1304
  %v1306 = vpop.f32.mrb[0].mxu0
  %v1307 = vpop.f32.mrb[0].mxu0
  %v1308 = vadd.f32 0.0, %v1307
  %v1309 = vpop.f32.mrb[0].mxu0
  %1310 = vmatprep.mubr.bf16.mxu0 0
  %1311 = vmatmul.mubr.bf16.gmra.mrb[0].mxu0 %v1166
  %v1312 = vpop.f32.mrb[0].mxu0
  %v1313 = vadd.f32 0.0, %v1312
  %v1314 = vpop.f32.mrb[0].mxu0
  %v1315 = vpop.f32.mrb[0].mxu0
  %v1316 = vadd.f32 0.0, %v1315
  %v1317 = vpop.f32.mrb[0].mxu0
  %1318 = vmatprep.mubr.bf16.mxu0 0
  %1319 = vmatmul.mubr.bf16.gmra.mrb[0].mxu0 %v1169
  %v1320 = vpop.f32.mrb[0].mxu0
  %v1321 = vadd.f32 0.0, %v1320
  %v1322 = vpop.f32.mrb[0].mxu0
  %v1323 = vpop.f32.mrb[0].mxu0
  %v1324 = vadd.f32 0.0, %v1323
  %v1325 = vpop.f32.mrb[0].mxu0
  %1326 = vmatprep.mubr.bf16.mxu0 0
  %1327 = vmatmul.mubr.bf16.gmra.mrb[0].mxu0 %v1172
  %v1328 = vpop.f32.mrb[0].mxu0
  %v1329 = vadd.f32 0.0, %v1328
  %v1330 = vpop.f32.mrb[0].mxu0
  %v1331 = vpop.f32.mrb[0].mxu0
  %v1332 = vadd.f32 0.0, %v1331
  %v1333 = vpop.f32.mrb[0].mxu0
  %1334 = vdwg.mxu0
  %v1343 = vunpack.c.l.b16 %v1069
  %v1344 = vunpack.c.l.b16 %v1070
  %v1345 = vunpack.c.l.b16 %v1071
  %v1346 = vunpack.c.l.b16 %v1072
  %v1347 = vunpack.c.l.b16 %v1073
  %v1348 = vunpack.c.l.b16 %v1074
  %v1349 = vunpack.c.l.b16 %v1075
  %v1350 = vunpack.c.l.b16 %v1076
  %v1351 = vpack.c.b16 %v1344, %v1343
  %v1352 = vpack.c.b16 %v1346, %v1345
  %v1353 = vpack.c.b16 %v1348, %v1347
  %v1354 = vpack.c.b16 %v1350, %v1349
  %v1360 = vsel %vm1125, %v1053, 0
  %v1363 = vsel %vm1125, %v1054, 0
  %v1366 = vsel %vm1125, %v1055, 0
  %v1369 = vsel %vm1125, %v1056, 0
  %v1372 = vsel %vm1125, %v1057, 0
  %v1375 = vsel %vm1125, %v1058, 0
  %v1378 = vsel %vm1125, %v1059, 0
  %v1381 = vsel %vm1125, %v1060, 0
  %v1384 = vsel %vm1125, %v1061, 0
  %v1387 = vsel %vm1125, %v1062, 0
  %v1390 = vsel %vm1125, %v1063, 0
  %v1393 = vsel %vm1125, %v1064, 0
  %v1396 = vsel %vm1125, %v1065, 0
  %v1399 = vsel %vm1125, %v1066, 0
  %v1402 = vsel %vm1125, %v1067, 0
  %v1405 = vsel %vm1125, %v1068, 0
  %1407 = vmatprep.subr.bf16.mxu0 0
  %1408 = vmatpush1.bf16.msra.mxu0 %v1351
  %1409 = vmatprep.subr.bf16.mxu0 0
  %1410 = vmatpush1.bf16.msra.mxu0 %v1352
  %1411 = vmatprep.subr.bf16.mxu0 0
  %1412 = vmatpush1.bf16.msra.mxu0 %v1353
  %1413 = vmatprep.subr.bf16.mxu0 0
  %1414 = vmatpush1.bf16.msra.mxu0 %v1354
  %1415 = vmatprep.subr.bf16.mxu0 0
  %1416 = vmatpush1.bf16.msra.mxu0 0
  %1417 = vmatprep.subr.bf16.mxu0 0
  %1418 = vmatpush1.bf16.msra.mxu0 0
  %1419 = vmatprep.subr.bf16.mxu0 0
  %1420 = vmatpush1.bf16.msra.mxu0 0
  %1421 = vmatprep.subr.bf16.mxu0 0
  %1422 = vmatpush1.bf16.msra.mxu0 0
  %1423 = vmatprep.subr.bf16.mxu0 0
  %1424 = vmatpush1.bf16.msra.mxu0 0
  %1425 = vmatprep.subr.bf16.mxu0 0
  %1426 = vmatpush1.bf16.msra.mxu0 0
  %1427 = vmatprep.subr.bf16.mxu0 0
  %1428 = vmatpush1.bf16.msra.mxu0 0
  %1429 = vmatprep.subr.bf16.mxu0 0
  %1430 = vmatpush1.bf16.msra.mxu0 0
  %1431 = vmatprep.subr.bf16.mxu0 0
  %1432 = vmatpush1.bf16.msra.mxu0 0
  %1433 = vmatprep.subr.bf16.mxu0 0
  %1434 = vmatpush1.bf16.msra.mxu0 0
  %1435 = vmatprep.subr.bf16.mxu0 0
  %1436 = vmatpush1.bf16.msra.mxu0 0
  %1437 = vmatprep.subr.bf16.mxu0 0
  %1438 = vmatpush1.bf16.msra.mxu0 0
  %1439 = vmatprep.mubr.bf16.mxu0 0
  %1440 = vmatmul.mubr.bf16.gmra.mrb[0].mxu0 %v1360
  %v1441 = vpop.f32.mrb[0].mxu0
  %v1442 = vadd.f32 %v1209, %v1441
  %v1443 = vpop.f32.mrb[0].mxu0
  %v1444 = vpop.f32.mrb[0].mxu0
  %v1445 = vadd.f32 %v1212, %v1444
  %v1446 = vpop.f32.mrb[0].mxu0
  %1447 = vmatprep.mubr.bf16.mxu0 0
  %1448 = vmatmul.mubr.bf16.gmra.mrb[0].mxu0 %v1363
  %v1449 = vpop.f32.mrb[0].mxu0
  %v1450 = vadd.f32 %v1217, %v1449
  %v1451 = vpop.f32.mrb[0].mxu0
  %v1452 = vpop.f32.mrb[0].mxu0
  %v1453 = vadd.f32 %v1220, %v1452
  %v1454 = vpop.f32.mrb[0].mxu0
  %1455 = vmatprep.mubr.bf16.mxu0 0
  %1456 = vmatmul.mubr.bf16.gmra.mrb[0].mxu0 %v1366
  %v1457 = vpop.f32.mrb[0].mxu0
  %v1458 = vadd.f32 %v1225, %v1457
  %v1459 = vpop.f32.mrb[0].mxu0
  %v1460 = vpop.f32.mrb[0].mxu0
  %v1461 = vadd.f32 %v1228, %v1460
  %v1462 = vpop.f32.mrb[0].mxu0
  %1463 = vmatprep.mubr.bf16.mxu0 0
  %1464 = vmatmul.mubr.bf16.gmra.mrb[0].mxu0 %v1369
  %v1465 = vpop.f32.mrb[0].mxu0
  %v1466 = vadd.f32 %v1233, %v1465
  %v1467 = vpop.f32.mrb[0].mxu0
  %v1468 = vpop.f32.mrb[0].mxu0
  %v1469 = vadd.f32 %v1236, %v1468
  %v1470 = vpop.f32.mrb[0].mxu0
  %1471 = vmatprep.mubr.bf16.mxu0 0
  %1472 = vmatmul.mubr.bf16.gmra.mrb[0].mxu0 %v1372
  %v1473 = vpop.f32.mrb[0].mxu0
  %v1474 = vadd.f32 %v1241, %v1473
  %v1475 = vpop.f32.mrb[0].mxu0
  %v1476 = vpop.f32.mrb[0].mxu0
  %v1477 = vadd.f32 %v1244, %v1476
  %v1478 = vpop.f32.mrb[0].mxu0
  %1479 = vmatprep.mubr.bf16.mxu0 0
  %1480 = vmatmul.mubr.bf16.gmra.mrb[0].mxu0 %v1375
  %v1481 = vpop.f32.mrb[0].mxu0
  %v1482 = vadd.f32 %v1249, %v1481
  %v1483 = vpop.f32.mrb[0].mxu0
  %v1484 = vpop.f32.mrb[0].mxu0
  %v1485 = vadd.f32 %v1252, %v1484
  %v1486 = vpop.f32.mrb[0].mxu0
  %1487 = vmatprep.mubr.bf16.mxu0 0
  %1488 = vmatmul.mubr.bf16.gmra.mrb[0].mxu0 %v1378
  %v1489 = vpop.f32.mrb[0].mxu0
  %v1490 = vadd.f32 %v1257, %v1489
  %v1491 = vpop.f32.mrb[0].mxu0
  %v1492 = vpop.f32.mrb[0].mxu0
  %v1493 = vadd.f32 %v1260, %v1492
  %v1494 = vpop.f32.mrb[0].mxu0
  %1495 = vmatprep.mubr.bf16.mxu0 0
  %1496 = vmatmul.mubr.bf16.gmra.mrb[0].mxu0 %v1381
  %v1497 = vpop.f32.mrb[0].mxu0
  %v1498 = vadd.f32 %v1265, %v1497
  %v1499 = vpop.f32.mrb[0].mxu0
  %v1500 = vpop.f32.mrb[0].mxu0
  %v1501 = vadd.f32 %v1268, %v1500
  %v1502 = vpop.f32.mrb[0].mxu0
  %1503 = vmatprep.mubr.bf16.mxu0 0
  %1504 = vmatmul.mubr.bf16.gmra.mrb[0].mxu0 %v1384
  %v1505 = vpop.f32.mrb[0].mxu0
  %v1506 = vadd.f32 %v1273, %v1505
  %v1507 = vpop.f32.mrb[0].mxu0
  %v1508 = vpop.f32.mrb[0].mxu0
  %v1509 = vadd.f32 %v1276, %v1508
  %v1510 = vpop.f32.mrb[0].mxu0
  %1511 = vmatprep.mubr.bf16.mxu0 0
  %1512 = vmatmul.mubr.bf16.gmra.mrb[0].mxu0 %v1387
  %v1513 = vpop.f32.mrb[0].mxu0
  %v1514 = vadd.f32 %v1281, %v1513
  %v1515 = vpop.f32.mrb[0].mxu0
  %v1516 = vpop.f32.mrb[0].mxu0
  %v1517 = vadd.f32 %v1284, %v1516
  %v1518 = vpop.f32.mrb[0].mxu0
  %1519 = vmatprep.mubr.bf16.mxu0 0
  %1520 = vmatmul.mubr.bf16.gmra.mrb[0].mxu0 %v1390
  %v1521 = vpop.f32.mrb[0].mxu0
  %v1522 = vadd.f32 %v1289, %v1521
  %v1523 = vpop.f32.mrb[0].mxu0
  %v1524 = vpop.f32.mrb[0].mxu0
  %v1525 = vadd.f32 %v1292, %v1524
  %v1526 = vpop.f32.mrb[0].mxu0
  %1527 = vmatprep.mubr.bf16.mxu0 0
  %1528 = vmatmul.mubr.bf16.gmra.mrb[0].mxu0 %v1393
  %v1529 = vpop.f32.mrb[0].mxu0
  %v1530 = vadd.f32 %v1297, %v1529
  %v1531 = vpop.f32.mrb[0].mxu0
  %v1532 = vpop.f32.mrb[0].mxu0
  %v1533 = vadd.f32 %v1300, %v1532
  %v1534 = vpop.f32.mrb[0].mxu0
  %1535 = vmatprep.mubr.bf16.mxu0 0
  %1536 = vmatmul.mubr.bf16.gmra.mrb[0].mxu0 %v1396
  %v1537 = vpop.f32.mrb[0].mxu0
  %v1538 = vadd.f32 %v1305, %v1537
  %v1539 = vpop.f32.mrb[0].mxu0
  %v1540 = vpop.f32.mrb[0].mxu0
  %v1541 = vadd.f32 %v1308, %v1540
  %v1542 = vpop.f32.mrb[0].mxu0
  %1543 = vmatprep.mubr.bf16.mxu0 0
  %1544 = vmatmul.mubr.bf16.gmra.mrb[0].mxu0 %v1399
  %v1545 = vpop.f32.mrb[0].mxu0
  %v1546 = vadd.f32 %v1313, %v1545
  %v1547 = vpop.f32.mrb[0].mxu0
  %v1548 = vpop.f32.mrb[0].mxu0
  %v1549 = vadd.f32 %v1316, %v1548
  %v1550 = vpop.f32.mrb[0].mxu0
  %1551 = vmatprep.mubr.bf16.mxu0 0
  %1552 = vmatmul.mubr.bf16.gmra.mrb[0].mxu0 %v1402
  %v1553 = vpop.f32.mrb[0].mxu0
  %v1554 = vadd.f32 %v1321, %v1553
  %v1555 = vpop.f32.mrb[0].mxu0
  %v1556 = vpop.f32.mrb[0].mxu0
  %v1557 = vadd.f32 %v1324, %v1556
  %v1558 = vpop.f32.mrb[0].mxu0
  %1559 = vmatprep.mubr.bf16.mxu0 0
  %1560 = vmatmul.mubr.bf16.gmra.mrb[0].mxu0 %v1405
  %v1561 = vpop.f32.mrb[0].mxu0
  %v1562 = vadd.f32 %v1329, %v1561
  %v1563 = vpop.f32.mrb[0].mxu0
  %v1564 = vpop.f32.mrb[0].mxu0
  %v1565 = vadd.f32 %v1332, %v1564
  %v1566 = vpop.f32.mrb[0].mxu0
  %1567 = vdwg.mxu0
  %v1568 = vld [vmem:[%s9] sm:$0x1]
  %v1570 = vlaneseq
  %v1571 = vshrl.u32 %v1570, 7
  %v1572 = vsub.s32 0, %v1571
  %v1573 = vrot.slane %v1568, %v1572
  %v1575 = vadd.f32 %v1442, %v1573
  %v1576 = vadd.f32 %v1445, %v1573
  %v1577 = vadd.f32 %v1450, %v1573
  %v1578 = vadd.f32 %v1453, %v1573
  %v1579 = vadd.f32 %v1458, %v1573
  %v1580 = vadd.f32 %v1461, %v1573
  %v1581 = vadd.f32 %v1466, %v1573
  %v1582 = vadd.f32 %v1469, %v1573
  %v1583 = vadd.f32 %v1474, %v1573
  %v1584 = vadd.f32 %v1477, %v1573
  %v1585 = vadd.f32 %v1482, %v1573
  %v1586 = vadd.f32 %v1485, %v1573
  %v1587 = vadd.f32 %v1490, %v1573
  %v1588 = vadd.f32 %v1493, %v1573
  %v1589 = vadd.f32 %v1498, %v1573
  %v1590 = vadd.f32 %v1501, %v1573
  %v1591 = vadd.f32 %v1506, %v1573
  %v1592 = vadd.f32 %v1509, %v1573
  %v1593 = vadd.f32 %v1514, %v1573
  %v1594 = vadd.f32 %v1517, %v1573
  %v1595 = vadd.f32 %v1522, %v1573
  %v1596 = vadd.f32 %v1525, %v1573
  %v1597 = vadd.f32 %v1530, %v1573
  %v1598 = vadd.f32 %v1533, %v1573
  %v1599 = vadd.f32 %v1538, %v1573
  %v1600 = vadd.f32 %v1541, %v1573
  %v1601 = vadd.f32 %v1546, %v1573
  %v1602 = vadd.f32 %v1549, %v1573
  %v1603 = vadd.f32 %v1554, %v1573
  %v1604 = vadd.f32 %v1557, %v1573
  %v1605 = vadd.f32 %v1562, %v1573
  %v1606 = vadd.f32 %v1565, %v1573
  %v1607 = vsel %vm1125, %v1575, -inf
  %1608 = vmax.xlane.f32.xlu0 %v1607
  %v1609 = vpop.xlane.xlu0 %1608
  %v1610 = vsel %vm1125, %v1576, -inf
  %1611 = vmax.xlane.f32.xlu0 %v1610
  %v1612 = vpop.xlane.xlu0 %1611
  %v1613 = vsel %vm1125, %v1577, -inf
  %1614 = vmax.xlane.f32.xlu0 %v1613
  %v1615 = vpop.xlane.xlu0 %1614
  %v1616 = vsel %vm1125, %v1578, -inf
  %1617 = vmax.xlane.f32.xlu0 %v1616
  %v1618 = vpop.xlane.xlu0 %1617
  %v1619 = vsel %vm1125, %v1579, -inf
  %1620 = vmax.xlane.f32.xlu0 %v1619
  %v1621 = vpop.xlane.xlu0 %1620
  %v1622 = vsel %vm1125, %v1580, -inf
  %1623 = vmax.xlane.f32.xlu0 %v1622
  %v1624 = vpop.xlane.xlu0 %1623
  %v1625 = vsel %vm1125, %v1581, -inf
  %1626 = vmax.xlane.f32.xlu0 %v1625
  %v1627 = vpop.xlane.xlu0 %1626
  %v1628 = vsel %vm1125, %v1582, -inf
  %1629 = vmax.xlane.f32.xlu0 %v1628
  %v1630 = vpop.xlane.xlu0 %1629
  %v1631 = vsel %vm1125, %v1583, -inf
  %1632 = vmax.xlane.f32.xlu0 %v1631
  %v1633 = vpop.xlane.xlu0 %1632
  %v1634 = vsel %vm1125, %v1584, -inf
  %1635 = vmax.xlane.f32.xlu0 %v1634
  %v1636 = vpop.xlane.xlu0 %1635
  %v1637 = vsel %vm1125, %v1585, -inf
  %1638 = vmax.xlane.f32.xlu0 %v1637
  %v1639 = vpop.xlane.xlu0 %1638
  %v1640 = vsel %vm1125, %v1586, -inf
  %1641 = vmax.xlane.f32.xlu0 %v1640
  %v1642 = vpop.xlane.xlu0 %1641
  %v1643 = vsel %vm1125, %v1587, -inf
  %1644 = vmax.xlane.f32.xlu0 %v1643
  %v1645 = vpop.xlane.xlu0 %1644
  %v1646 = vsel %vm1125, %v1588, -inf
  %1647 = vmax.xlane.f32.xlu0 %v1646
  %v1648 = vpop.xlane.xlu0 %1647
  %v1649 = vsel %vm1125, %v1589, -inf
  %1650 = vmax.xlane.f32.xlu0 %v1649
  %v1651 = vpop.xlane.xlu0 %1650
  %v1652 = vsel %vm1125, %v1590, -inf
  %1653 = vmax.xlane.f32.xlu0 %v1652
  %v1654 = vpop.xlane.xlu0 %1653
  %v1655 = vsel %vm1125, %v1591, -inf
  %1656 = vmax.xlane.f32.xlu0 %v1655
  %v1657 = vpop.xlane.xlu0 %1656
  %v1658 = vsel %vm1125, %v1592, -inf
  %1659 = vmax.xlane.f32.xlu0 %v1658
  %v1660 = vpop.xlane.xlu0 %1659
  %v1661 = vsel %vm1125, %v1593, -inf
  %1662 = vmax.xlane.f32.xlu0 %v1661
  %v1663 = vpop.xlane.xlu0 %1662
  %v1664 = vsel %vm1125, %v1594, -inf
  %1665 = vmax.xlane.f32.xlu0 %v1664
  %v1666 = vpop.xlane.xlu0 %1665
  %v1667 = vsel %vm1125, %v1595, -inf
  %1668 = vmax.xlane.f32.xlu0 %v1667
  %v1669 = vpop.xlane.xlu0 %1668
  %v1670 = vsel %vm1125, %v1596, -inf
  %1671 = vmax.xlane.f32.xlu0 %v1670
  %v1672 = vpop.xlane.xlu0 %1671
  %v1673 = vsel %vm1125, %v1597, -inf
  %1674 = vmax.xlane.f32.xlu0 %v1673
  %v1675 = vpop.xlane.xlu0 %1674
  %v1676 = vsel %vm1125, %v1598, -inf
  %1677 = vmax.xlane.f32.xlu0 %v1676
  %v1678 = vpop.xlane.xlu0 %1677
  %v1679 = vsel %vm1125, %v1599, -inf
  %1680 = vmax.xlane.f32.xlu0 %v1679
  %v1681 = vpop.xlane.xlu0 %1680
  %v1682 = vsel %vm1125, %v1600, -inf
  %1683 = vmax.xlane.f32.xlu0 %v1682
  %v1684 = vpop.xlane.xlu0 %1683
  %v1685 = vsel %vm1125, %v1601, -inf
  %1686 = vmax.xlane.f32.xlu0 %v1685
  %v1687 = vpop.xlane.xlu0 %1686
  %v1688 = vsel %vm1125, %v1602, -inf
  %1689 = vmax.xlane.f32.xlu0 %v1688
  %v1690 = vpop.xlane.xlu0 %1689
  %v1691 = vsel %vm1125, %v1603, -inf
  %1692 = vmax.xlane.f32.xlu0 %v1691
  %v1693 = vpop.xlane.xlu0 %1692
  %v1694 = vsel %vm1125, %v1604, -inf
  %1695 = vmax.xlane.f32.xlu0 %v1694
  %v1696 = vpop.xlane.xlu0 %1695
  %v1697 = vsel %vm1125, %v1605, -inf
  %1698 = vmax.xlane.f32.xlu0 %v1697
  %v1699 = vpop.xlane.xlu0 %1698
  %v1700 = vsel %vm1125, %v1606, -inf
  %1701 = vmax.xlane.f32.xlu0 %v1700
  %v1702 = vpop.xlane.xlu0 %1701
  %v1703 = vsub.f32 %v1575, %v1609
  %v1704 = vsub.f32 %v1576, %v1612
  %v1705 = vsub.f32 %v1577, %v1615
  %v1706 = vsub.f32 %v1578, %v1618
  %v1707 = vsub.f32 %v1579, %v1621
  %v1708 = vsub.f32 %v1580, %v1624
  %v1709 = vsub.f32 %v1581, %v1627
  %v1710 = vsub.f32 %v1582, %v1630
  %v1711 = vsub.f32 %v1583, %v1633
  %v1712 = vsub.f32 %v1584, %v1636
  %v1713 = vsub.f32 %v1585, %v1639
  %v1714 = vsub.f32 %v1586, %v1642
  %v1715 = vsub.f32 %v1587, %v1645
  %v1716 = vsub.f32 %v1588, %v1648
  %v1717 = vsub.f32 %v1589, %v1651
  %v1718 = vsub.f32 %v1590, %v1654
  %v1719 = vsub.f32 %v1591, %v1657
  %v1720 = vsub.f32 %v1592, %v1660
  %v1721 = vsub.f32 %v1593, %v1663
  %v1722 = vsub.f32 %v1594, %v1666
  %v1723 = vsub.f32 %v1595, %v1669
  %v1724 = vsub.f32 %v1596, %v1672
  %v1725 = vsub.f32 %v1597, %v1675
  %v1726 = vsub.f32 %v1598, %v1678
  %v1727 = vsub.f32 %v1599, %v1681
  %v1728 = vsub.f32 %v1600, %v1684
  %v1729 = vsub.f32 %v1601, %v1687
  %v1730 = vsub.f32 %v1602, %v1690
  %v1731 = vsub.f32 %v1603, %v1693
  %v1732 = vsub.f32 %v1604, %v1696
  %v1733 = vsub.f32 %v1605, %v1699
  %v1734 = vsub.f32 %v1606, %v1702
  %v1735 = vmul.f32 %v1703, 1.442695
  %v1736 = vpow.pop %v1735
  %v1737 = vmul.f32 %v1704, 1.442695
  %v1738 = vpow.pop %v1737
  %v1739 = vmul.f32 %v1705, 1.442695
  %v1740 = vpow.pop %v1739
  %v1741 = vmul.f32 %v1706, 1.442695
  %v1742 = vpow.pop %v1741
  %v1743 = vmul.f32 %v1707, 1.442695
  %v1744 = vpow.pop %v1743
  %v1745 = vmul.f32 %v1708, 1.442695
  %v1746 = vpow.pop %v1745
  %v1747 = vmul.f32 %v1709, 1.442695
  %v1748 = vpow.pop %v1747
  %v1749 = vmul.f32 %v1710, 1.442695
  %v1750 = vpow.pop %v1749
  %v1751 = vmul.f32 %v1711, 1.442695
  %v1752 = vpow.pop %v1751
  %v1753 = vmul.f32 %v1712, 1.442695
  %v1754 = vpow.pop %v1753
  %v1755 = vmul.f32 %v1713, 1.442695
  %v1756 = vpow.pop %v1755
  %v1757 = vmul.f32 %v1714, 1.442695
  %v1758 = vpow.pop %v1757
  %v1759 = vmul.f32 %v1715, 1.442695
  %v1760 = vpow.pop %v1759
  %v1761 = vmul.f32 %v1716, 1.442695
  %v1762 = vpow.pop %v1761
  %v1763 = vmul.f32 %v1717, 1.442695
  %v1764 = vpow.pop %v1763
  %v1765 = vmul.f32 %v1718, 1.442695
  %v1766 = vpow.pop %v1765
  %v1767 = vmul.f32 %v1719, 1.442695
  %v1768 = vpow.pop %v1767
  %v1769 = vmul.f32 %v1720, 1.442695
  %v1770 = vpow.pop %v1769
  %v1771 = vmul.f32 %v1721, 1.442695
  %v1772 = vpow.pop %v1771
  %v1773 = vmul.f32 %v1722, 1.442695
  %v1774 = vpow.pop %v1773
  %v1775 = vmul.f32 %v1723, 1.442695
  %v1776 = vpow.pop %v1775
  %v1777 = vmul.f32 %v1724, 1.442695
  %v1778 = vpow.pop %v1777
  %v1779 = vmul.f32 %v1725, 1.442695
  %v1780 = vpow.pop %v1779
  %v1781 = vmul.f32 %v1726, 1.442695
  %v1782 = vpow.pop %v1781
  %v1783 = vmul.f32 %v1727, 1.442695
  %v1784 = vpow.pop %v1783
  %v1785 = vmul.f32 %v1728, 1.442695
  %v1786 = vpow.pop %v1785
  %v1787 = vmul.f32 %v1729, 1.442695
  %v1788 = vpow.pop %v1787
  %v1789 = vmul.f32 %v1730, 1.442695
  %v1790 = vpow.pop %v1789
  %v1791 = vmul.f32 %v1731, 1.442695
  %v1792 = vpow.pop %v1791
  %v1793 = vmul.f32 %v1732, 1.442695
  %v1794 = vpow.pop %v1793
  %v1795 = vmul.f32 %v1733, 1.442695
  %v1796 = vpow.pop %v1795
  %v1797 = vmul.f32 %v1734, 1.442695
  %v1798 = vpow.pop %v1797
  %v1799 = vld [vmem:[%s10] sm:$0xff]
  %v1800 = vld [vmem:[%s10 + $0x8] sm:$0xff]
  %v1801 = vld [vmem:[%s10 + $0x10] sm:$0xff]
  %v1802 = vld [vmem:[%s10 + $0x18] sm:$0xff]
  %v1803 = vld [vmem:[%s10 + $0x20] sm:$0xff]
  %v1804 = vld [vmem:[%s10 + $0x28] sm:$0xff]
  %v1805 = vld [vmem:[%s10 + $0x30] sm:$0xff]
  %v1806 = vld [vmem:[%s10 + $0x38] sm:$0xff]
  %v1808 = vsel %vm1125, %v1736, 0
  %v1811 = vsel %vm1125, %v1738, 0
  %v1814 = vsel %vm1125, %v1740, 0
  %v1817 = vsel %vm1125, %v1742, 0
  %v1820 = vsel %vm1125, %v1744, 0
  %v1823 = vsel %vm1125, %v1746, 0
  %v1826 = vsel %vm1125, %v1748, 0
  %v1829 = vsel %vm1125, %v1750, 0
  %v1832 = vsel %vm1125, %v1752, 0
  %v1835 = vsel %vm1125, %v1754, 0
  %v1838 = vsel %vm1125, %v1756, 0
  %v1841 = vsel %vm1125, %v1758, 0
  %v1844 = vsel %vm1125, %v1760, 0
  %v1847 = vsel %vm1125, %v1762, 0
  %v1850 = vsel %vm1125, %v1764, 0
  %v1853 = vsel %vm1125, %v1766, 0
  %v1856 = vsel %vm1125, %v1768, 0
  %v1859 = vsel %vm1125, %v1770, 0
  %v1862 = vsel %vm1125, %v1772, 0
  %v1865 = vsel %vm1125, %v1774, 0
  %v1868 = vsel %vm1125, %v1776, 0
  %v1871 = vsel %vm1125, %v1778, 0
  %v1874 = vsel %vm1125, %v1780, 0
  %v1877 = vsel %vm1125, %v1782, 0
  %v1880 = vsel %vm1125, %v1784, 0
  %v1883 = vsel %vm1125, %v1786, 0
  %v1886 = vsel %vm1125, %v1788, 0
  %v1889 = vsel %vm1125, %v1790, 0
  %v1892 = vsel %vm1125, %v1792, 0
  %v1895 = vsel %vm1125, %v1794, 0
  %v1898 = vsel %vm1125, %v1796, 0
  %v1901 = vsel %vm1125, %v1798, 0
  %1903 = vmatprep.subr.mxu0 0.0
  %1904 = vmatpush1.msra.mxu0 %v1799
  %1905 = vmatprep.subr.mxu0 0.0
  %1906 = vmatpush1.msra.mxu0 %v1800
  %1907 = vmatprep.subr.mxu0 0.0
  %1908 = vmatpush1.msra.mxu0 %v1801
  %1909 = vmatprep.subr.mxu0 0.0
  %1910 = vmatpush1.msra.mxu0 %v1802
  %1911 = vmatprep.subr.mxu0 0.0
  %1912 = vmatpush1.msra.mxu0 %v1803
  %1913 = vmatprep.subr.mxu0 0.0
  %1914 = vmatpush1.msra.mxu0 %v1804
  %1915 = vmatprep.subr.mxu0 0.0
  %1916 = vmatpush1.msra.mxu0 %v1805
  %1917 = vmatprep.subr.mxu0 0.0
  %1918 = vmatpush1.msra.mxu0 %v1806
  %1919 = vmatprep.subr.mxu0 0.0
  %1920 = vmatpush1.msra.mxu0 0.0
  %1921 = vmatprep.subr.mxu0 0.0
  %1922 = vmatpush1.msra.mxu0 0.0
  %1923 = vmatprep.subr.mxu0 0.0
  %1924 = vmatpush1.msra.mxu0 0.0
  %1925 = vmatprep.subr.mxu0 0.0
  %1926 = vmatpush1.msra.mxu0 0.0
  %1927 = vmatprep.subr.mxu0 0.0
  %1928 = vmatpush1.msra.mxu0 0.0
  %1929 = vmatprep.subr.mxu0 0.0
  %1930 = vmatpush1.msra.mxu0 0.0
  %1931 = vmatprep.subr.mxu0 0.0
  %1932 = vmatpush1.msra.mxu0 0.0
  %1933 = vmatprep.subr.mxu0 0.0
  %1934 = vmatpush1.msra.mxu0 0.0
  %1935 = vmatprep.subr.mxu0 0.0
  %1936 = vmatpush1.msra.mxu0 0.0
  %1937 = vmatprep.subr.mxu0 0.0
  %1938 = vmatpush1.msra.mxu0 0.0
  %1939 = vmatprep.subr.mxu0 0.0
  %1940 = vmatpush1.msra.mxu0 0.0
  %1941 = vmatprep.subr.mxu0 0.0
  %1942 = vmatpush1.msra.mxu0 0.0
  %1943 = vmatprep.subr.mxu0 0.0
  %1944 = vmatpush1.msra.mxu0 0.0
  %1945 = vmatprep.subr.mxu0 0.0
  %1946 = vmatpush1.msra.mxu0 0.0
  %1947 = vmatprep.subr.mxu0 0.0
  %1948 = vmatpush1.msra.mxu0 0.0
  %1949 = vmatprep.subr.mxu0 0.0
  %1950 = vmatpush1.msra.mxu0 0.0
  %1951 = vmatprep.subr.mxu0 0.0
  %1952 = vmatpush1.msra.mxu0 0.0
  %1953 = vmatprep.subr.mxu0 0.0
  %1954 = vmatpush1.msra.mxu0 0.0
  %1955 = vmatprep.subr.mxu0 0.0
  %1956 = vmatpush1.msra.mxu0 0.0
  %1957 = vmatprep.subr.mxu0 0.0
  %1958 = vmatpush1.msra.mxu0 0.0
  %1959 = vmatprep.subr.mxu0 0.0
  %1960 = vmatpush1.msra.mxu0 0.0
  %1961 = vmatprep.subr.mxu0 0.0
  %1962 = vmatpush1.msra.mxu0 0.0
  %1963 = vmatprep.subr.mxu0 0.0
  %1964 = vmatpush1.msra.mxu0 0.0
  %1965 = vmatprep.subr.mxu0 0.0
  %1966 = vmatpush1.msra.mxu0 0.0
  %1967 = vmatprep.mubr.f32.mxu0 0.0
  %1968 = vmatmul.mubr.f32.gmra.mrb[0].mxu0 %v1808
  %v1969 = vpop.f32.mrb[0].mxu0
  %v1970 = vadd.f32 0.0, %v1969
  %v1971 = vpop.f32.mrb[0].mxu0
  %1972 = vmatprep.mubr.f32.mxu0 0.0
  %1973 = vmatmul.mubr.f32.gmra.mrb[0].mxu0 %v1811
  %v1974 = vpop.f32.mrb[0].mxu0
  %v1975 = vadd.f32 0.0, %v1974
  %v1976 = vpop.f32.mrb[0].mxu0
  %1977 = vmatprep.mubr.f32.mxu0 0.0
  %1978 = vmatmul.mubr.f32.gmra.mrb[0].mxu0 %v1814
  %v1979 = vpop.f32.mrb[0].mxu0
  %v1980 = vadd.f32 0.0, %v1979
  %v1981 = vpop.f32.mrb[0].mxu0
  %1982 = vmatprep.mubr.f32.mxu0 0.0
  %1983 = vmatmul.mubr.f32.gmra.mrb[0].mxu0 %v1817
  %v1984 = vpop.f32.mrb[0].mxu0
  %v1985 = vadd.f32 0.0, %v1984
  %v1986 = vpop.f32.mrb[0].mxu0
  %1987 = vmatprep.mubr.f32.mxu0 0.0
  %1988 = vmatmul.mubr.f32.gmra.mrb[0].mxu0 %v1820
  %v1989 = vpop.f32.mrb[0].mxu0
  %v1990 = vadd.f32 0.0, %v1989
  %v1991 = vpop.f32.mrb[0].mxu0
  %1992 = vmatprep.mubr.f32.mxu0 0.0
  %1993 = vmatmul.mubr.f32.gmra.mrb[0].mxu0 %v1823
  %v1994 = vpop.f32.mrb[0].mxu0
  %v1995 = vadd.f32 0.0, %v1994
  %v1996 = vpop.f32.mrb[0].mxu0
  %1997 = vmatprep.mubr.f32.mxu0 0.0
  %1998 = vmatmul.mubr.f32.gmra.mrb[0].mxu0 %v1826
  %v1999 = vpop.f32.mrb[0].mxu0
  %v2000 = vadd.f32 0.0, %v1999
  %v2001 = vpop.f32.mrb[0].mxu0
  %2002 = vmatprep.mubr.f32.mxu0 0.0
  %2003 = vmatmul.mubr.f32.gmra.mrb[0].mxu0 %v1829
  %v2004 = vpop.f32.mrb[0].mxu0
  %v2005 = vadd.f32 0.0, %v2004
  %v2006 = vpop.f32.mrb[0].mxu0
  %2007 = vmatprep.mubr.f32.mxu0 0.0
  %2008 = vmatmul.mubr.f32.gmra.mrb[0].mxu0 %v1832
  %v2009 = vpop.f32.mrb[0].mxu0
  %v2010 = vadd.f32 0.0, %v2009
  %v2011 = vpop.f32.mrb[0].mxu0
  %2012 = vmatprep.mubr.f32.mxu0 0.0
  %2013 = vmatmul.mubr.f32.gmra.mrb[0].mxu0 %v1835
  %v2014 = vpop.f32.mrb[0].mxu0
  %v2015 = vadd.f32 0.0, %v2014
  %v2016 = vpop.f32.mrb[0].mxu0
  %2017 = vmatprep.mubr.f32.mxu0 0.0
  %2018 = vmatmul.mubr.f32.gmra.mrb[0].mxu0 %v1838
  %v2019 = vpop.f32.mrb[0].mxu0
  %v2020 = vadd.f32 0.0, %v2019
  %v2021 = vpop.f32.mrb[0].mxu0
  %2022 = vmatprep.mubr.f32.mxu0 0.0
  %2023 = vmatmul.mubr.f32.gmra.mrb[0].mxu0 %v1841
  %v2024 = vpop.f32.mrb[0].mxu0
  %v2025 = vadd.f32 0.0, %v2024
  %v2026 = vpop.f32.mrb[0].mxu0
  %2027 = vmatprep.mubr.f32.mxu0 0.0
  %2028 = vmatmul.mubr.f32.gmra.mrb[0].mxu0 %v1844
  %v2029 = vpop.f32.mrb[0].mxu0
  %v2030 = vadd.f32 0.0, %v2029
  %v2031 = vpop.f32.mrb[0].mxu0
  %2032 = vmatprep.mubr.f32.mxu0 0.0
  %2033 = vmatmul.mubr.f32.gmra.mrb[0].mxu0 %v1847
  %v2034 = vpop.f32.mrb[0].mxu0
  %v2035 = vadd.f32 0.0, %v2034
  %v2036 = vpop.f32.mrb[0].mxu0
  %2037 = vmatprep.mubr.f32.mxu0 0.0
  %2038 = vmatmul.mubr.f32.gmra.mrb[0].mxu0 %v1850
  %v2039 = vpop.f32.mrb[0].mxu0
  %v2040 = vadd.f32 0.0, %v2039
  %v2041 = vpop.f32.mrb[0].mxu0
  %2042 = vmatprep.mubr.f32.mxu0 0.0
  %2043 = vmatmul.mubr.f32.gmra.mrb[0].mxu0 %v1853
  %v2044 = vpop.f32.mrb[0].mxu0
  %v2045 = vadd.f32 0.0, %v2044
  %v2046 = vpop.f32.mrb[0].mxu0
  %2047 = vmatprep.mubr.f32.mxu0 0.0
  %2048 = vmatmul.mubr.f32.gmra.mrb[0].mxu0 %v1856
  %v2049 = vpop.f32.mrb[0].mxu0
  %v2050 = vadd.f32 0.0, %v2049
  %v2051 = vpop.f32.mrb[0].mxu0
  %2052 = vmatprep.mubr.f32.mxu0 0.0
  %2053 = vmatmul.mubr.f32.gmra.mrb[0].mxu0 %v1859
  %v2054 = vpop.f32.mrb[0].mxu0
  %v2055 = vadd.f32 0.0, %v2054
  %v2056 = vpop.f32.mrb[0].mxu0
  %2057 = vmatprep.mubr.f32.mxu0 0.0
  %2058 = vmatmul.mubr.f32.gmra.mrb[0].mxu0 %v1862
  %v2059 = vpop.f32.mrb[0].mxu0
  %v2060 = vadd.f32 0.0, %v2059
  %v2061 = vpop.f32.mrb[0].mxu0
  %2062 = vmatprep.mubr.f32.mxu0 0.0
  %2063 = vmatmul.mubr.f32.gmra.mrb[0].mxu0 %v1865
  %v2064 = vpop.f32.mrb[0].mxu0
  %v2065 = vadd.f32 0.0, %v2064
  %v2066 = vpop.f32.mrb[0].mxu0
  %2067 = vmatprep.mubr.f32.mxu0 0.0
  %2068 = vmatmul.mubr.f32.gmra.mrb[0].mxu0 %v1868
  %v2069 = vpop.f32.mrb[0].mxu0
  %v2070 = vadd.f32 0.0, %v2069
  %v2071 = vpop.f32.mrb[0].mxu0
  %2072 = vmatprep.mubr.f32.mxu0 0.0
  %2073 = vmatmul.mubr.f32.gmra.mrb[0].mxu0 %v1871
  %v2074 = vpop.f32.mrb[0].mxu0
  %v2075 = vadd.f32 0.0, %v2074
  %v2076 = vpop.f32.mrb[0].mxu0
  %2077 = vmatprep.mubr.f32.mxu0 0.0
  %2078 = vmatmul.mubr.f32.gmra.mrb[0].mxu0 %v1874
  %v2079 = vpop.f32.mrb[0].mxu0
  %v2080 = vadd.f32 0.0, %v2079
  %v2081 = vpop.f32.mrb[0].mxu0
  %2082 = vmatprep.mubr.f32.mxu0 0.0
  %2083 = vmatmul.mubr.f32.gmra.mrb[0].mxu0 %v1877
  %v2084 = vpop.f32.mrb[0].mxu0
  %v2085 = vadd.f32 0.0, %v2084
  %v2086 = vpop.f32.mrb[0].mxu0
  %2087 = vmatprep.mubr.f32.mxu0 0.0
  %2088 = vmatmul.mubr.f32.gmra.mrb[0].mxu0 %v1880
  %v2089 = vpop.f32.mrb[0].mxu0
  %v2090 = vadd.f32 0.0, %v2089
  %v2091 = vpop.f32.mrb[0].mxu0
  %2092 = vmatprep.mubr.f32.mxu0 0.0
  %2093 = vmatmul.mubr.f32.gmra.mrb[0].mxu0 %v1883
  %v2094 = vpop.f32.mrb[0].mxu0
  %v2095 = vadd.f32 0.0, %v2094
  %v2096 = vpop.f32.mrb[0].mxu0
  %2097 = vmatprep.mubr.f32.mxu0 0.0
  %2098 = vmatmul.mubr.f32.gmra.mrb[0].mxu0 %v1886
  %v2099 = vpop.f32.mrb[0].mxu0
  %v2100 = vadd.f32 0.0, %v2099
  %v2101 = vpop.f32.mrb[0].mxu0
  %2102 = vmatprep.mubr.f32.mxu0 0.0
  %2103 = vmatmul.mubr.f32.gmra.mrb[0].mxu0 %v1889
  %v2104 = vpop.f32.mrb[0].mxu0
  %v2105 = vadd.f32 0.0, %v2104
  %v2106 = vpop.f32.mrb[0].mxu0
  %2107 = vmatprep.mubr.f32.mxu0 0.0
  %2108 = vmatmul.mubr.f32.gmra.mrb[0].mxu0 %v1892
  %v2109 = vpop.f32.mrb[0].mxu0
  %v2110 = vadd.f32 0.0, %v2109
  %v2111 = vpop.f32.mrb[0].mxu0
  %2112 = vmatprep.mubr.f32.mxu0 0.0
  %2113 = vmatmul.mubr.f32.gmra.mrb[0].mxu0 %v1895
  %v2114 = vpop.f32.mrb[0].mxu0
  %v2115 = vadd.f32 0.0, %v2114
  %v2116 = vpop.f32.mrb[0].mxu0
  %2117 = vmatprep.mubr.f32.mxu0 0.0
  %2118 = vmatmul.mubr.f32.gmra.mrb[0].mxu0 %v1898
  %v2119 = vpop.f32.mrb[0].mxu0
  %v2120 = vadd.f32 0.0, %v2119
  %v2121 = vpop.f32.mrb[0].mxu0
  %2122 = vmatprep.mubr.f32.mxu0 0.0
  %2123 = vmatmul.mubr.f32.gmra.mrb[0].mxu0 %v1901
  %v2124 = vpop.f32.mrb[0].mxu0
  %v2125 = vadd.f32 0.0, %v2124
  %v2126 = vpop.f32.mrb[0].mxu0
  %2127 = vdwg.mxu0
  %v2128 = vrcp.pop %v1970
  %v2129 = vrcp.pop %v1975
  %v2130 = vrcp.pop %v1980
  %v2131 = vrcp.pop %v1985
  %v2132 = vrcp.pop %v1990
  %v2133 = vrcp.pop %v1995
  %v2134 = vrcp.pop %v2000
  %v2135 = vrcp.pop %v2005
  %v2136 = vrcp.pop %v2010
  %v2137 = vrcp.pop %v2015
  %v2138 = vrcp.pop %v2020
  %v2139 = vrcp.pop %v2025
  %v2140 = vrcp.pop %v2030
  %v2141 = vrcp.pop %v2035
  %v2142 = vrcp.pop %v2040
  %v2143 = vrcp.pop %v2045
  %v2144 = vrcp.pop %v2050
  %v2145 = vrcp.pop %v2055
  %v2146 = vrcp.pop %v2060
  %v2147 = vrcp.pop %v2065
  %v2148 = vrcp.pop %v2070
  %v2149 = vrcp.pop %v2075
  %v2150 = vrcp.pop %v2080
  %v2151 = vrcp.pop %v2085
  %v2152 = vrcp.pop %v2090
  %v2153 = vrcp.pop %v2095
  %v2154 = vrcp.pop %v2100
  %v2155 = vrcp.pop %v2105
  %v2156 = vrcp.pop %v2110
  %v2157 = vrcp.pop %v2115
  %v2158 = vrcp.pop %v2120
  %v2159 = vrcp.pop %v2125
  %v2160 = vmul.f32 %v1970, %v2128
  %v2161 = vmul.f32 %v1975, %v2129
  %v2162 = vmul.f32 %v1980, %v2130
  %v2163 = vmul.f32 %v1985, %v2131
  %v2164 = vmul.f32 %v1990, %v2132
  %v2165 = vmul.f32 %v1995, %v2133
  %v2166 = vmul.f32 %v2000, %v2134
  %v2167 = vmul.f32 %v2005, %v2135
  %v2168 = vmul.f32 %v2010, %v2136
  %v2169 = vmul.f32 %v2015, %v2137
  %v2170 = vmul.f32 %v2020, %v2138
  %v2171 = vmul.f32 %v2025, %v2139
  %v2172 = vmul.f32 %v2030, %v2140
  %v2173 = vmul.f32 %v2035, %v2141
  %v2174 = vmul.f32 %v2040, %v2142
  %v2175 = vmul.f32 %v2045, %v2143
  %v2176 = vmul.f32 %v2050, %v2144
  %v2177 = vmul.f32 %v2055, %v2145
  %v2178 = vmul.f32 %v2060, %v2146
  %v2179 = vmul.f32 %v2065, %v2147
  %v2180 = vmul.f32 %v2070, %v2148
  %v2181 = vmul.f32 %v2075, %v2149
  %v2182 = vmul.f32 %v2080, %v2150
  %v2183 = vmul.f32 %v2085, %v2151
  %v2184 = vmul.f32 %v2090, %v2152
  %v2185 = vmul.f32 %v2095, %v2153
  %v2186 = vmul.f32 %v2100, %v2154
  %v2187 = vmul.f32 %v2105, %v2155
  %v2188 = vmul.f32 %v2110, %v2156
  %v2189 = vmul.f32 %v2115, %v2157
  %v2190 = vmul.f32 %v2120, %v2158
  %v2191 = vmul.f32 %v2125, %v2159
  %v2192 = vsub.f32 2.0, %v2160
  %v2193 = vsub.f32 2.0, %v2161
  %v2194 = vsub.f32 2.0, %v2162
  %v2195 = vsub.f32 2.0, %v2163
  %v2196 = vsub.f32 2.0, %v2164
  %v2197 = vsub.f32 2.0, %v2165
  %v2198 = vsub.f32 2.0, %v2166
  %v2199 = vsub.f32 2.0, %v2167
  %v2200 = vsub.f32 2.0, %v2168
  %v2201 = vsub.f32 2.0, %v2169
  %v2202 = vsub.f32 2.0, %v2170
  %v2203 = vsub.f32 2.0, %v2171
  %v2204 = vsub.f32 2.0, %v2172
  %v2205 = vsub.f32 2.0, %v2173
  %v2206 = vsub.f32 2.0, %v2174
  %v2207 = vsub.f32 2.0, %v2175
  %v2208 = vsub.f32 2.0, %v2176
  %v2209 = vsub.f32 2.0, %v2177
  %v2210 = vsub.f32 2.0, %v2178
  %v2211 = vsub.f32 2.0, %v2179
  %v2212 = vsub.f32 2.0, %v2180
  %v2213 = vsub.f32 2.0, %v2181
  %v2214 = vsub.f32 2.0, %v2182
  %v2215 = vsub.f32 2.0, %v2183
  %v2216 = vsub.f32 2.0, %v2184
  %v2217 = vsub.f32 2.0, %v2185
  %v2218 = vsub.f32 2.0, %v2186
  %v2219 = vsub.f32 2.0, %v2187
  %v2220 = vsub.f32 2.0, %v2188
  %v2221 = vsub.f32 2.0, %v2189
  %v2222 = vsub.f32 2.0, %v2190
  %v2223 = vsub.f32 2.0, %v2191
  %v2224 = vmul.f32 %v2128, %v2192
  %v2225 = vmul.f32 %v2129, %v2193
  %v2226 = vmul.f32 %v2130, %v2194
  %v2227 = vmul.f32 %v2131, %v2195
  %v2228 = vmul.f32 %v2132, %v2196
  %v2229 = vmul.f32 %v2133, %v2197
  %v2230 = vmul.f32 %v2134, %v2198
  %v2231 = vmul.f32 %v2135, %v2199
  %v2232 = vmul.f32 %v2136, %v2200
  %v2233 = vmul.f32 %v2137, %v2201
  %v2234 = vmul.f32 %v2138, %v2202
  %v2235 = vmul.f32 %v2139, %v2203
  %v2236 = vmul.f32 %v2140, %v2204
  %v2237 = vmul.f32 %v2141, %v2205
  %v2238 = vmul.f32 %v2142, %v2206
  %v2239 = vmul.f32 %v2143, %v2207
  %v2240 = vmul.f32 %v2144, %v2208
  %v2241 = vmul.f32 %v2145, %v2209
  %v2242 = vmul.f32 %v2146, %v2210
  %v2243 = vmul.f32 %v2147, %v2211
  %v2244 = vmul.f32 %v2148, %v2212
  %v2245 = vmul.f32 %v2149, %v2213
  %v2246 = vmul.f32 %v2150, %v2214
  %v2247 = vmul.f32 %v2151, %v2215
  %v2248 = vmul.f32 %v2152, %v2216
  %v2249 = vmul.f32 %v2153, %v2217
  %v2250 = vmul.f32 %v2154, %v2218
  %v2251 = vmul.f32 %v2155, %v2219
  %v2252 = vmul.f32 %v2156, %v2220
  %v2253 = vmul.f32 %v2157, %v2221
  %v2254 = vmul.f32 %v2158, %v2222
  %v2255 = vmul.f32 %v2159, %v2223
  %v2256 = vmul.f32 %v1736, %v2224
  %v2257 = vmul.f32 %v1738, %v2225
  %v2258 = vmul.f32 %v1740, %v2226
  %v2259 = vmul.f32 %v1742, %v2227
  %v2260 = vmul.f32 %v1744, %v2228
  %v2261 = vmul.f32 %v1746, %v2229
  %v2262 = vmul.f32 %v1748, %v2230
  %v2263 = vmul.f32 %v1750, %v2231
  %v2264 = vmul.f32 %v1752, %v2232
  %v2265 = vmul.f32 %v1754, %v2233
  %v2266 = vmul.f32 %v1756, %v2234
  %v2267 = vmul.f32 %v1758, %v2235
  %v2268 = vmul.f32 %v1760, %v2236
  %v2269 = vmul.f32 %v1762, %v2237
  %v2270 = vmul.f32 %v1764, %v2238
  %v2271 = vmul.f32 %v1766, %v2239
  %v2272 = vmul.f32 %v1768, %v2240
  %v2273 = vmul.f32 %v1770, %v2241
  %v2274 = vmul.f32 %v1772, %v2242
  %v2275 = vmul.f32 %v1774, %v2243
  %v2276 = vmul.f32 %v1776, %v2244
  %v2277 = vmul.f32 %v1778, %v2245
  %v2278 = vmul.f32 %v1780, %v2246
  %v2279 = vmul.f32 %v1782, %v2247
  %v2280 = vmul.f32 %v1784, %v2248
  %v2281 = vmul.f32 %v1786, %v2249
  %v2282 = vmul.f32 %v1788, %v2250
  %v2283 = vmul.f32 %v1790, %v2251
  %v2284 = vmul.f32 %v1792, %v2252
  %v2285 = vmul.f32 %v1794, %v2253
  %v2286 = vmul.f32 %v1796, %v2254
  %v2287 = vmul.f32 %v1798, %v2255
  %2288 = vst.msk [vmem:[%s11] sm:$0xff] %vm1125, %v2256
  %2289 = vst.msk [vmem:[%s11 + $0x8] sm:$0xff] %vm1125, %v2257
  %2290 = vst.msk [vmem:[%s11 + $0x10] sm:$0xff] %vm1125, %v2258
  %2291 = vst.msk [vmem:[%s11 + $0x18] sm:$0xff] %vm1125, %v2259
  %2292 = vst.msk [vmem:[%s11 + $0x20] sm:$0xff] %vm1125, %v2260
  %2293 = vst.msk [vmem:[%s11 + $0x28] sm:$0xff] %vm1125, %v2261
  %2294 = vst.msk [vmem:[%s11 + $0x30] sm:$0xff] %vm1125, %v2262
  %2295 = vst.msk [vmem:[%s11 + $0x38] sm:$0xff] %vm1125, %v2263
  %2296 = vst.msk [vmem:[%s11 + $0x40] sm:$0xff] %vm1125, %v2264
  %2297 = vst.msk [vmem:[%s11 + $0x48] sm:$0xff] %vm1125, %v2265
  %2298 = vst.msk [vmem:[%s11 + $0x50] sm:$0xff] %vm1125, %v2266
  %2299 = vst.msk [vmem:[%s11 + $0x58] sm:$0xff] %vm1125, %v2267
  %2300 = vst.msk [vmem:[%s11 + $0x60] sm:$0xff] %vm1125, %v2268
  %2301 = vst.msk [vmem:[%s11 + $0x68] sm:$0xff] %vm1125, %v2269
  %2302 = vst.msk [vmem:[%s11 + $0x70] sm:$0xff] %vm1125, %v2270
  %2303 = vst.msk [vmem:[%s11 + $0x78] sm:$0xff] %vm1125, %v2271
  %2304 = vst.msk [vmem:[%s11 + $0x80] sm:$0xff] %vm1125, %v2272
  %2305 = vst.msk [vmem:[%s11 + $0x88] sm:$0xff] %vm1125, %v2273
  %2306 = vst.msk [vmem:[%s11 + $0x90] sm:$0xff] %vm1125, %v2274
  %2307 = vst.msk [vmem:[%s11 + $0x98] sm:$0xff] %vm1125, %v2275
  %2308 = vst.msk [vmem:[%s11 + $0xa0] sm:$0xff] %vm1125, %v2276
  %2309 = vst.msk [vmem:[%s11 + $0xa8] sm:$0xff] %vm1125, %v2277
  %2310 = vst.msk [vmem:[%s11 + $0xb0] sm:$0xff] %vm1125, %v2278
  %2311 = vst.msk [vmem:[%s11 + $0xb8] sm:$0xff] %vm1125, %v2279
  %2312 = vst.msk [vmem:[%s11 + $0xc0] sm:$0xff] %vm1125, %v2280
  %2313 = vst.msk [vmem:[%s11 + $0xc8] sm:$0xff] %vm1125, %v2281
  %2314 = vst.msk [vmem:[%s11 + $0xd0] sm:$0xff] %vm1125, %v2282
  %2315 = vst.msk [vmem:[%s11 + $0xd8] sm:$0xff] %vm1125, %v2283
  %2316 = vst.msk [vmem:[%s11 + $0xe0] sm:$0xff] %vm1125, %v2284
  %2317 = vst.msk [vmem:[%s11 + $0xe8] sm:$0xff] %vm1125, %v2285
  %2318 = vst.msk [vmem:[%s11 + $0xf0] sm:$0xff] %vm1125, %v2286
  %2319 = vst.msk [vmem:[%s11 + $0xf8] sm:$0xff] %vm1125, %v2287
  // Predicated region
  $region46: #{tpu_custom_call.1} parent=0 // pred_check
    _
  $region47: #{tpu_custom_call.1} parent=0 // pred_check_branch
    %2321 = sbr.rel (0) target = $region49
  $region48: #{tpu_custom_call.1} parent=0 // pred_region
    _
  $region49: #{tpu_custom_call.1} parent=0 // pred_fallthru
    _
  // Predicated region
  $region50: #{tpu_custom_call.1} parent=0 // pred_check
    _
  $region51: #{tpu_custom_call.1} parent=0 // pred_check_branch
    %2323 = sbr.rel (0) target = $region53
  $region52: #{tpu_custom_call.1} parent=0 // pred_region
    _
  $region53: #{tpu_custom_call.1} parent=0 // pred_fallthru
    _

</llo_original>
